<compile_context>
chip_gen: v7x
topology: tpu7x:2x2x1
jax: 0.10.0
libtpu: 0.0.40
codegen_flags: <defaults>
</compile_context>

<pallas_src>
import jax
import jax.numpy as jnp
from jax.experimental import pallas as pl
from jax.experimental.pallas import tpu as pltpu

LEAKY_SLOPE = 0.01                    # PyTorch nn.LeakyReLU default negative_slope
DIMS = [18, 15, 12, 9, 6, 3]          # layer widths
IN_DIM = DIMS[0]
OUT_DIM = DIMS[-1]

# 8-aligned padded widths per layer (rows of z_i / rows of h_i).
OUT_PADS = (16, 16, 16, 8, 8)
IN_PADS = (IN_DIM, 16, 16, 16, 8)     # layer 0 consumes the raw 18-wide input
SLAB_ROWS = 16                        # max(OUT_PADS)
SLAB_COLS = 24                        # >= IN_DIM, rectangular weight slab

MAX_TILE = 2048                       # lane tile upper bound (multiple of 128)
_HIGHEST = jax.lax.Precision.HIGHEST


def mlp_kernel(x_ref, w_ref, b_ref, o_ref):
    """Whole MLP for one batch tile.

    x_ref: (tile, 18)   raw input rows, exactly as laid out in HBM
    w_ref: (5, 16, 24)  zero-padded weights (resident)
    b_ref: (5, 16, 1)   zero-padded biases  (resident)
    o_ref: (3, tile)    lane-dense output (batch on lanes)
    """
    # Layer 0: contract the raw (tile, 18) block directly against W1
    # ('ok,bk->ob') so the batch lands on lanes without any wrapper relayout.
    z = jax.lax.dot_general(
        w_ref[0, :OUT_PADS[0], :IN_PADS[0]], x_ref[...],
        dimension_numbers=(((1,), (1,)), ((), ())),
        preferred_element_type=jnp.float32,
        precision=_HIGHEST,
    ) + b_ref[0, :OUT_PADS[0]]
    h = jnp.maximum(z, LEAKY_SLOPE * z)                   # LeakyReLU

    for i in range(1, 5):                                 # fully unrolled, tiny trip count
        # OUT_PADS[i-1] == IN_PADS[i], so `h` already has the right row count;
        # padded rows/cols are exactly zero, so they propagate as zeros.
        z = jnp.dot(
            w_ref[i, :OUT_PADS[i], :IN_PADS[i]], h,
            preferred_element_type=jnp.float32,
            precision=_HIGHEST,
        ) + b_ref[i, :OUT_PADS[i]]
        if i < 4:
            h = jnp.maximum(z, LEAKY_SLOPE * z)           # LeakyReLU
        else:
            h = jnp.maximum(z, 0.0)                       # final ReLU

    o_ref[...] = h[:OUT_DIM, :].astype(o_ref.dtype)


def init_params(key):
    """PyTorch-style params: w_i of shape (out, in), b_i of shape (out,),
    U(-1/sqrt(fan_in), 1/sqrt(fan_in)) like nn.Linear's default init."""
    params = []
    for i in range(5):
        fan_in, fan_out = DIMS[i], DIMS[i + 1]
        key, kw, kb = jax.random.split(key, 3)
        bound = 1.0 / jnp.sqrt(jnp.float32(fan_in))
        w = jax.random.uniform(kw, (fan_out, fan_in), jnp.float32, -bound, bound)
        b = jax.random.uniform(kb, (fan_out,), jnp.float32, -bound, bound)
        params += [w, b]
    return params


def pack_params(params):
    """Pack the 10 tensors into two zero-padded slabs: (5,16,24) and (5,16,1)."""
    wp = jnp.zeros((5, SLAB_ROWS, SLAB_COLS), jnp.float32)
    bp = jnp.zeros((5, SLAB_ROWS, 1), jnp.float32)
    for i in range(5):
        w, b = params[2 * i], params[2 * i + 1]
        fout, fin = w.shape
        wp = wp.at[i, :fout, :fin].set(w)
        bp = bp.at[i, :fout, 0].set(b)
    return wp, bp


def _num_tensorcores() -> int:
    """TensorCores a 'parallel' grid axis can shard over on this chip."""
    try:
        kind = jax.devices()[0].device_kind.lower()
    except Exception:
        return 1
    if "v7" in kind:
        return 2                      # v7x: 2 TensorCores per chip
    if "v4" in kind or "v5p" in kind:
        return 2                      # megacore
    return 1                          # v5e / v6e / others


def _pick_tile(batch: int, n_cores: int) -> int:
    """Lane-tile size: multiple of 128, <= MAX_TILE, generation-aware."""
    b128 = ((batch + 127) // 128) * 128
    if n_cores <= 1 or b128 <= 128:
        # Single TensorCore: fewest, biggest steps win (each extra grid step
        # costs ~0.35us of fixed overhead, more than the work in a step).
        return min(MAX_TILE, b128)
    # Two TensorCores: >=2 steps so both cores get work; >=4 steps (>=2 per
    # core) for large batches so each core can pipeline its input DMA.
    target_steps = 4 if b128 >= 2048 else 2
    tile = ((b128 // target_steps + 127) // 128) * 128
    return max(128, min(MAX_TILE, tile))


@jax.jit
def mlp_forward(x, wp, bp):
    """x: (B, 18) f32 -> (B, 3) f32."""
    batch = x.shape[0]
    tile = _pick_tile(batch, _num_tensorcores())
    b_pad = pl.cdiv(batch, tile) * tile

    # Only pad batch rows when B is not a multiple of the tile (no feature
    # padding, no transpose, no relayout pass in the common aligned case).
    x_in = x if b_pad == batch else jnp.pad(x, ((0, b_pad - batch), (0, 0)))

    out_t = pl.pallas_call(
        mlp_kernel,
        out_shape=jax.ShapeDtypeStruct((OUT_DIM, b_pad), jnp.float32),
        grid_spec=pltpu.PrefetchScalarGridSpec(
            num_scalar_prefetch=0,
            grid=(b_pad // tile,),
            in_specs=[
                pl.BlockSpec((tile, IN_DIM), lambda i: (i, 0)),                 # raw X rows
                pl.BlockSpec((5, SLAB_ROWS, SLAB_COLS), lambda i: (0, 0, 0)),   # weights (resident)
                pl.BlockSpec((5, SLAB_ROWS, 1), lambda i: (0, 0, 0)),           # biases  (resident)
            ],
            out_specs=pl.BlockSpec((OUT_DIM, tile), lambda i: (0, i)),          # lane-dense out
        ),
        compiler_params=pltpu.CompilerParams(
            dimension_semantics=("parallel",),   # shards batch steps across TCs on v7x
        ),
    )(x_in, wp, bp)

    # (3, b_pad) -> (B, 3): tiny relative to the 18-wide input read; kept only
    # so the public API matches the PyTorch module's (B, 3) output.
    return out_t[:, :batch].T


def reference_forward(x, params):
    h = x
    for i in range(4):
        w, b = params[2 * i], params[2 * i + 1]
        h = jnp.dot(h, w.T, precision=_HIGHEST) + b
        h = jnp.where(h > 0, h, LEAKY_SLOPE * h)
    w, b = params[8], params[9]
    return jnp.maximum(jnp.dot(h, w.T, precision=_HIGHEST) + b, 0.0)


if __name__ == "__main__":
    key = jax.random.PRNGKey(0)
    key, kx = jax.random.split(key)

    params = init_params(key)
    wp, bp = pack_params(params)

    # Small primary check (single grid step, batch padded 8 -> 128).
    B = 8
    x = jax.random.normal(kx, (B, IN_DIM), jnp.float32)
    out = jax.block_until_ready(mlp_forward(x, wp, bp))
    ref = reference_forward(x, params)
    assert out.shape == (B, OUT_DIM)
    assert jnp.allclose(out, ref, atol=1e-5, rtol=1e-5), "mismatch vs reference (B=8)"

    # Non-multiple batch: exercises cdiv + batch padding and (on 2-TC chips)
    # a multi-step parallel grid.
    key, kx2 = jax.random.split(key)
    B2 = 300
    x2 = jax.random.normal(kx2, (B2, IN_DIM), jnp.float32)
    out2 = jax.block_until_ready(mlp_forward(x2, wp, bp))
    ref2 = reference_forward(x2, params)
    assert out2.shape == (B2, OUT_DIM)
    assert jnp.allclose(out2, ref2, atol=1e-5, rtol=1e-5), "mismatch vs reference (B=300)"

    print("KERNEL_OK")
</pallas_src>

<mosaic_0001>
module attributes {stable_mosaic.version = 11 : i64} {
  func.func @mlp_kernel(%arg0: i32, %arg1: memref<128x18xf32, #tpu.memory_space<vmem>>, %arg2: memref<5x16x24xf32, #tpu.memory_space<vmem>>, %arg3: memref<5x16x1xf32, #tpu.memory_space<vmem>>, %arg4: memref<3x128xf32, #tpu.memory_space<vmem>>) attributes {dimension_semantics = [#tpu.dimension_semantics<parallel>], iteration_bounds = array<i64: 1>, scalar_prefetch = 0 : i64, scratch_operands = 0 : i64, tpu.core_type = #tpu.core_type<tc>, window_params = [{transform_indices = @transform_0, window_bounds = array<i64: 128, 18>}, {pipeline_mode = #tpu.pipeline_mode<synchronous>, transform_indices = @transform_1, window_bounds = array<i64: 5, 16, 24>}, {pipeline_mode = #tpu.pipeline_mode<synchronous>, transform_indices = @transform_2, window_bounds = array<i64: 5, 16, 1>}, {transform_indices = @transform_3, window_bounds = array<i64: 3, 128>}]} {
    %c0 = arith.constant 0 : index
    %c0_0 = arith.constant 0 : index
    %c0_1 = arith.constant 0 : index
    %0 = vector.load %arg2[%c0, %c0_0, %c0_1] : memref<5x16x24xf32, #tpu.memory_space<vmem>>, vector<1x16x18xf32>
    %1 = vector.shape_cast %0 : vector<1x16x18xf32> to vector<16x18xf32>
    %c0_2 = arith.constant 0 : index
    %c0_3 = arith.constant 0 : index
    %2 = vector.load %arg1[%c0_2, %c0_3] : memref<128x18xf32, #tpu.memory_space<vmem>>, vector<128x18xf32>
    %cst = arith.constant dense<0.000000e+00> : vector<16x128xf32>
    %3 = tpu.matmul %1, %2, %cst {dimension_numbers = #tpu.dot_dimension_numbers<[1], [1], [0], [0], [0, 0, 1, 0], [], []>, precision = #tpu.contract_precision<fp32>} : vector<16x18xf32>, vector<128x18xf32>, vector<16x128xf32> -> vector<16x128xf32>
    %c0_4 = arith.constant 0 : index
    %c0_5 = arith.constant 0 : index
    %c0_6 = arith.constant 0 : index
    %4 = vector.load %arg3[%c0_4, %c0_5, %c0_6] : memref<5x16x1xf32, #tpu.memory_space<vmem>>, vector<1x16x1xf32>
    %5 = vector.shape_cast %4 : vector<1x16x1xf32> to vector<16x1xf32>
    %6 = vector.broadcast %5 : vector<16x1xf32> to vector<16x128xf32>
    %7 = arith.addf %3, %6 : vector<16x128xf32>
    %cst_7 = arith.constant 0.00999999977 : f32
    %8 = vector.broadcast %cst_7 : f32 to vector<16x128xf32>
    %9 = arith.mulf %8, %7 : vector<16x128xf32>
    %10 = arith.maximumf %7, %9 : vector<16x128xf32>
    %c1 = arith.constant 1 : index
    %c0_8 = arith.constant 0 : index
    %c0_9 = arith.constant 0 : index
    %11 = vector.load %arg2[%c1, %c0_8, %c0_9] : memref<5x16x24xf32, #tpu.memory_space<vmem>>, vector<1x16x16xf32>
    %12 = vector.shape_cast %11 : vector<1x16x16xf32> to vector<16x16xf32>
    %cst_10 = arith.constant dense<0.000000e+00> : vector<16x128xf32>
    %13 = tpu.matmul %12, %10, %cst_10 {dimension_numbers = #tpu.dot_dimension_numbers<[1], [0], [0], [1], [0, 0, 1, 1], [], []>, precision = #tpu.contract_precision<fp32>} : vector<16x16xf32>, vector<16x128xf32>, vector<16x128xf32> -> vector<16x128xf32>
    %c1_11 = arith.constant 1 : index
    %c0_12 = arith.constant 0 : index
    %c0_13 = arith.constant 0 : index
    %14 = vector.load %arg3[%c1_11, %c0_12, %c0_13] : memref<5x16x1xf32, #tpu.memory_space<vmem>>, vector<1x16x1xf32>
    %15 = vector.shape_cast %14 : vector<1x16x1xf32> to vector<16x1xf32>
    %16 = vector.broadcast %15 : vector<16x1xf32> to vector<16x128xf32>
    %17 = arith.addf %13, %16 : vector<16x128xf32>
    %cst_14 = arith.constant 0.00999999977 : f32
    %18 = vector.broadcast %cst_14 : f32 to vector<16x128xf32>
    %19 = arith.mulf %18, %17 : vector<16x128xf32>
    %20 = arith.maximumf %17, %19 : vector<16x128xf32>
    %c2 = arith.constant 2 : index
    %c0_15 = arith.constant 0 : index
    %c0_16 = arith.constant 0 : index
    %21 = vector.load %arg2[%c2, %c0_15, %c0_16] : memref<5x16x24xf32, #tpu.memory_space<vmem>>, vector<1x16x16xf32>
    %22 = vector.shape_cast %21 : vector<1x16x16xf32> to vector<16x16xf32>
    %cst_17 = arith.constant dense<0.000000e+00> : vector<16x128xf32>
    %23 = tpu.matmul %22, %20, %cst_17 {dimension_numbers = #tpu.dot_dimension_numbers<[1], [0], [0], [1], [0, 0, 1, 1], [], []>, precision = #tpu.contract_precision<fp32>} : vector<16x16xf32>, vector<16x128xf32>, vector<16x128xf32> -> vector<16x128xf32>
    %c2_18 = arith.constant 2 : index
    %c0_19 = arith.constant 0 : index
    %c0_20 = arith.constant 0 : index
    %24 = vector.load %arg3[%c2_18, %c0_19, %c0_20] : memref<5x16x1xf32, #tpu.memory_space<vmem>>, vector<1x16x1xf32>
    %25 = vector.shape_cast %24 : vector<1x16x1xf32> to vector<16x1xf32>
    %26 = vector.broadcast %25 : vector<16x1xf32> to vector<16x128xf32>
    %27 = arith.addf %23, %26 : vector<16x128xf32>
    %cst_21 = arith.constant 0.00999999977 : f32
    %28 = vector.broadcast %cst_21 : f32 to vector<16x128xf32>
    %29 = arith.mulf %28, %27 : vector<16x128xf32>
    %30 = arith.maximumf %27, %29 : vector<16x128xf32>
    %c3 = arith.constant 3 : index
    %c0_22 = arith.constant 0 : index
    %c0_23 = arith.constant 0 : index
    %31 = vector.load %arg2[%c3, %c0_22, %c0_23] : memref<5x16x24xf32, #tpu.memory_space<vmem>>, vector<1x8x16xf32>
    %32 = vector.shape_cast %31 : vector<1x8x16xf32> to vector<8x16xf32>
    %cst_24 = arith.constant dense<0.000000e+00> : vector<8x128xf32>
    %33 = tpu.matmul %32, %30, %cst_24 {dimension_numbers = #tpu.dot_dimension_numbers<[1], [0], [0], [1], [0, 0, 1, 1], [], []>, precision = #tpu.contract_precision<fp32>} : vector<8x16xf32>, vector<16x128xf32>, vector<8x128xf32> -> vector<8x128xf32>
    %c3_25 = arith.constant 3 : index
    %c0_26 = arith.constant 0 : index
    %c0_27 = arith.constant 0 : index
    %34 = vector.load %arg3[%c3_25, %c0_26, %c0_27] : memref<5x16x1xf32, #tpu.memory_space<vmem>>, vector<1x8x1xf32>
    %35 = vector.shape_cast %34 : vector<1x8x1xf32> to vector<8x1xf32>
    %36 = vector.broadcast %35 : vector<8x1xf32> to vector<8x128xf32>
    %37 = arith.addf %33, %36 : vector<8x128xf32>
    %cst_28 = arith.constant 0.00999999977 : f32
    %38 = vector.broadcast %cst_28 : f32 to vector<8x128xf32>
    %39 = arith.mulf %38, %37 : vector<8x128xf32>
    %40 = arith.maximumf %37, %39 : vector<8x128xf32>
    %c4 = arith.constant 4 : index
    %c0_29 = arith.constant 0 : index
    %c0_30 = arith.constant 0 : index
    %41 = vector.load %arg2[%c4, %c0_29, %c0_30] : memref<5x16x24xf32, #tpu.memory_space<vmem>>, vector<1x8x8xf32>
    %42 = vector.shape_cast %41 : vector<1x8x8xf32> to vector<8x8xf32>
    %cst_31 = arith.constant dense<0.000000e+00> : vector<8x128xf32>
    %43 = tpu.matmul %42, %40, %cst_31 {dimension_numbers = #tpu.dot_dimension_numbers<[1], [0], [0], [1], [0, 0, 1, 1], [], []>, precision = #tpu.contract_precision<fp32>} : vector<8x8xf32>, vector<8x128xf32>, vector<8x128xf32> -> vector<8x128xf32>
    %c4_32 = arith.constant 4 : index
    %c0_33 = arith.constant 0 : index
    %c0_34 = arith.constant 0 : index
    %44 = vector.load %arg3[%c4_32, %c0_33, %c0_34] : memref<5x16x1xf32, #tpu.memory_space<vmem>>, vector<1x8x1xf32>
    %45 = vector.shape_cast %44 : vector<1x8x1xf32> to vector<8x1xf32>
    %46 = vector.broadcast %45 : vector<8x1xf32> to vector<8x128xf32>
    %47 = arith.addf %43, %46 : vector<8x128xf32>
    %cst_35 = arith.constant 0.000000e+00 : f32
    %48 = vector.broadcast %cst_35 : f32 to vector<8x128xf32>
    %49 = arith.maximumf %47, %48 : vector<8x128xf32>
    %50 = vector.extract_strided_slice %49 {offsets = [0, 0], sizes = [3, 128], strides = [1, 1]} : vector<8x128xf32> to vector<3x128xf32>
    %c0_36 = arith.constant 0 : index
    %c0_37 = arith.constant 0 : index
    %51 = vector.load %arg4[%c0_36, %c0_37] : memref<3x128xf32, #tpu.memory_space<vmem>>, vector<3x128xf32>
    tpu.vector_store %arg4[%c0_36, %c0_37], %50 {strides = array<i32>} : memref<3x128xf32, #tpu.memory_space<vmem>>, vector<3x128xf32>,
    return
  }
  func.func @transform_0(%arg0: i32) -> (i32, i32) {
    %c0_i32 = arith.constant 0 : i32
    %c0_i32_0 = arith.constant 0 : i32
    return %arg0, %c0_i32 : i32, i32
  }
  func.func @transform_1(%arg0: i32) -> (i32, i32, i32) {
    %c0_i32 = arith.constant 0 : i32
    %c0_i32_0 = arith.constant 0 : i32
    %c0_i32_1 = arith.constant 0 : i32
    %c0_i32_2 = arith.constant 0 : i32
    return %c0_i32, %c0_i32_0, %c0_i32_1 : i32, i32, i32
  }
  func.func @transform_2(%arg0: i32) -> (i32, i32, i32) {
    %c0_i32 = arith.constant 0 : i32
    %c0_i32_0 = arith.constant 0 : i32
    %c0_i32_1 = arith.constant 0 : i32
    %c0_i32_2 = arith.constant 0 : i32
    return %c0_i32, %c0_i32_0, %c0_i32_1 : i32, i32, i32
  }
  func.func @transform_3(%arg0: i32) -> (i32, i32) {
    %c0_i32 = arith.constant 0 : i32
    %c0_i32_0 = arith.constant 0 : i32
    return %c0_i32, %arg0 : i32, i32
  }
}

</mosaic_0001>

<llo_original>
// kernel: mlp_forward.1
$region0: #{mlp_forward.1}
  #allocation0 [shape = 'u32[]', space=smem, size = 0x4, offset = 0x4, fixed_abs, tag = 'smem constant byte address 0x4 - core index']
  #allocation1 [shape = 'u32[144,128]{1,0:T(1,128)}', space=vmem, size = 0x12000, scoped, tag = 'internal scratch']
  %s0 = inlined_call_operand.vmem [shape: f32[128,18], index: 0, kind: input, shape index: {}]
  %s1 = inlined_call_operand.vmem [shape: f32[5,16,24], index: 1, kind: input, shape index: {}]
  %s2 = inlined_call_operand.vmem [shape: f32[5,16,1], index: 2, kind: input, shape index: {}]
  %s3 = inlined_call_operand.vmem [shape: f32[3,128], index: 3, kind: output, shape index: {}]
  %s4 = sld [smem:[#allocation0]]
  $region22: #{mlp_forward.1} parent=0
    _
  %s6 = ssub.s32 1, %s4
  %s7 = scalar_select 0, %s6, %s4
  // Predicated region
  $region2: #{mlp_forward.1} parent=0 // pred_check
    _
  $region3: #{mlp_forward.1} parent=0 // pred_check_branch
    %9 = sbr.rel (0) target = $region5
  $region4: #{mlp_forward.1} parent=0 // pred_region
    _
  $region5: #{mlp_forward.1} parent=0 // pred_fallthru
    _
  // Predicated region
  $region6: #{mlp_forward.1} parent=0 // pred_check
    _
  $region7: #{mlp_forward.1} parent=0 // pred_check_branch
    %11 = sbr.rel (0) target = $region9
  $region8: #{mlp_forward.1} parent=0 // pred_region
    _
  $region9: #{mlp_forward.1} parent=0 // pred_fallthru
    _
  // Predicated region
  $region10: #{mlp_forward.1} parent=0 // pred_check
    _
  $region11: #{mlp_forward.1} parent=0 // pred_check_branch
    %13 = sbr.rel (0) target = $region13
  $region12: #{mlp_forward.1} parent=0 // pred_region
    _
  $region13: #{mlp_forward.1} parent=0 // pred_fallthru
    _
  %v14 = vld [vmem:[%s1] sm:$0xff]
  %v15 = vld [vmem:[%s1 + $0x8] sm:$0xff]
  %v16 = vld [vmem:[%s0] sm:$0xff]
  %v17 = vld [vmem:[%s0 + $0x8] sm:$0xff]
  %v18 = vld [vmem:[%s0 + $0x10] sm:$0xff]
  %v19 = vld [vmem:[%s0 + $0x18] sm:$0xff]
  %v20 = vld [vmem:[%s0 + $0x20] sm:$0xff]
  %v21 = vld [vmem:[%s0 + $0x28] sm:$0xff]
  %v22 = vld [vmem:[%s0 + $0x30] sm:$0xff]
  %v23 = vld [vmem:[%s0 + $0x38] sm:$0xff]
  %v24 = vld [vmem:[%s0 + $0x40] sm:$0xff]
  %v25 = vld [vmem:[%s0 + $0x48] sm:$0xff]
  %v26 = vld [vmem:[%s0 + $0x50] sm:$0xff]
  %v27 = vld [vmem:[%s0 + $0x58] sm:$0xff]
  %v28 = vld [vmem:[%s0 + $0x60] sm:$0xff]
  %v29 = vld [vmem:[%s0 + $0x68] sm:$0xff]
  %v30 = vld [vmem:[%s0 + $0x70] sm:$0xff]
  %v31 = vld [vmem:[%s0 + $0x78] sm:$0xff]
  %v32 = vld [vmem:[%s2] sm:$0xff]
  %v33 = vld [vmem:[%s2 + $0x8] sm:$0xff]
  %35 = vset.pattern.permute.xlu0 0
  %36 = vperm.xlu0 %35, %v32
  %v37 = vpop.permute.xlu0 %36
  %40 = vset.pattern.permute.xlu0 0
  %41 = vperm.xlu0 %40, %v33
  %v42 = vpop.permute.xlu0 %41
  %vm44 = vcmask 146432
  %v46 = vsel %vm44, %v14, 0
  %v49 = vsel %vm44, %v15, 0
  %v52 = vsel %vm44, %v16, 0
  %v55 = vsel %vm44, %v17, 0
  %v58 = vsel %vm44, %v18, 0
  %v61 = vsel %vm44, %v19, 0
  %v64 = vsel %vm44, %v20, 0
  %v67 = vsel %vm44, %v21, 0
  %v70 = vsel %vm44, %v22, 0
  %v73 = vsel %vm44, %v23, 0
  %v76 = vsel %vm44, %v24, 0
  %v79 = vsel %vm44, %v25, 0
  %v82 = vsel %vm44, %v26, 0
  %v85 = vsel %vm44, %v27, 0
  %v88 = vsel %vm44, %v28, 0
  %v91 = vsel %vm44, %v29, 0
  %v94 = vsel %vm44, %v30, 0
  %v97 = vsel %vm44, %v31, 0
  %99 = vmatprep.subr.mxu0 0.0
  %v100 = vand.u32 %v52, 4294901760
  %101 = vmatpush1.xpose.msra.mxu0 %v100
  %102 = vmatprep.subr.mxu0 0.0
  %v103 = vand.u32 %v55, 4294901760
  %104 = vmatpush1.xpose.msra.mxu0 %v103
  %105 = vmatprep.subr.mxu0 0.0
  %v106 = vand.u32 %v58, 4294901760
  %107 = vmatpush1.xpose.msra.mxu0 %v106
  %108 = vmatprep.subr.mxu0 0.0
  %v109 = vand.u32 %v61, 4294901760
  %110 = vmatpush1.xpose.msra.mxu0 %v109
  %111 = vmatprep.subr.mxu0 0.0
  %v112 = vand.u32 %v64, 4294901760
  %113 = vmatpush1.xpose.msra.mxu0 %v112
  %114 = vmatprep.subr.mxu0 0.0
  %v115 = vand.u32 %v67, 4294901760
  %116 = vmatpush1.xpose.msra.mxu0 %v115
  %117 = vmatprep.subr.mxu0 0.0
  %v118 = vand.u32 %v70, 4294901760
  %119 = vmatpush1.xpose.msra.mxu0 %v118
  %120 = vmatprep.subr.mxu0 0.0
  %v121 = vand.u32 %v73, 4294901760
  %122 = vmatpush1.xpose.msra.mxu0 %v121
  %123 = vmatprep.subr.mxu0 0.0
  %v124 = vand.u32 %v76, 4294901760
  %125 = vmatpush1.xpose.msra.mxu0 %v124
  %126 = vmatprep.subr.mxu0 0.0
  %v127 = vand.u32 %v79, 4294901760
  %128 = vmatpush1.xpose.msra.mxu0 %v127
  %129 = vmatprep.subr.mxu0 0.0
  %v130 = vand.u32 %v82, 4294901760
  %131 = vmatpush1.xpose.msra.mxu0 %v130
  %132 = vmatprep.subr.mxu0 0.0
  %v133 = vand.u32 %v85, 4294901760
  %134 = vmatpush1.xpose.msra.mxu0 %v133
  %135 = vmatprep.subr.mxu0 0.0
  %v136 = vand.u32 %v88, 4294901760
  %137 = vmatpush1.xpose.msra.mxu0 %v136
  %138 = vmatprep.subr.mxu0 0.0
  %v139 = vand.u32 %v91, 4294901760
  %140 = vmatpush1.xpose.msra.mxu0 %v139
  %141 = vmatprep.subr.mxu0 0.0
  %v142 = vand.u32 %v94, 4294901760
  %143 = vmatpush1.xpose.msra.mxu0 %v142
  %144 = vmatprep.subr.mxu0 0.0
  %v145 = vand.u32 %v97, 4294901760
  %146 = vmatpush1.xpose.msra.mxu0 %v145
  %147 = vmatprep.subr.mxu0 0.0
  %148 = vmatpush1.xpose.msra.mxu0 0.0
  %149 = vmatprep.subr.mxu0 0.0
  %150 = vmatpush1.xpose.msra.mxu0 0.0
  %151 = vmatprep.subr.mxu0 0.0
  %152 = vmatpush1.xpose.msra.mxu0 0.0
  %153 = vmatprep.subr.mxu0 0.0
  %154 = vmatpush1.xpose.msra.mxu0 0.0
  %155 = vmatprep.subr.mxu0 0.0
  %156 = vmatpush1.xpose.msra.mxu0 0.0
  %157 = vmatprep.subr.mxu0 0.0
  %158 = vmatpush1.xpose.msra.mxu0 0.0
  %159 = vmatprep.subr.mxu0 0.0
  %160 = vmatpush1.xpose.msra.mxu0 0.0
  %161 = vmatprep.subr.mxu0 0.0
  %162 = vmatpush1.xpose.msra.mxu0 0.0
  %163 = vmatprep.subr.mxu0 0.0
  %164 = vmatpush1.xpose.msra.mxu0 0.0
  %165 = vmatprep.subr.mxu0 0.0
  %166 = vmatpush1.xpose.msra.mxu0 0.0
  %167 = vmatprep.subr.mxu0 0.0
  %168 = vmatpush1.xpose.msra.mxu0 0.0
  %169 = vmatprep.subr.mxu0 0.0
  %170 = vmatpush1.xpose.msra.mxu0 0.0
  %171 = vmatprep.subr.mxu0 0.0
  %172 = vmatpush1.xpose.msra.mxu0 0.0
  %173 = vmatprep.subr.mxu0 0.0
  %174 = vmatpush1.xpose.msra.mxu0 0.0
  %175 = vmatprep.subr.mxu0 0.0
  %176 = vmatpush1.xpose.msra.mxu0 0.0
  %177 = vmatprep.subr.mxu0 0.0
  %178 = vmatpush1.xpose.msra.mxu0 0.0
  %179 = vmatprep.mubr.f32.mxu0 0.0
  %v180 = vand.u32 %v46, 4294901760
  %v181 = vsub.f32 %v46, %v180
  %v182 = vand.u32 %v181, 4294901760
  %v183 = vsub.f32 %v181, %v182
  %v184 = vand.u32 %v183, 4294901760
  %185 = vmatmul.mubr.f32.gmra.mrb[0].mxu0 %v184
  %v186 = vpop.f32.mrb[0].mxu0
  %v187 = vadd.f32 %v37, %v186
  %v188 = vpop.f32.mrb[0].mxu0
  %189 = vmatprep.mubr.f32.mxu0 0.0
  %v190 = vand.u32 %v49, 4294901760
  %v191 = vsub.f32 %v49, %v190
  %v192 = vand.u32 %v191, 4294901760
  %v193 = vsub.f32 %v191, %v192
  %v194 = vand.u32 %v193, 4294901760
  %195 = vmatmul.mubr.f32.gmra.mrb[0].mxu0 %v194
  %v196 = vpop.f32.mrb[0].mxu0
  %v197 = vadd.f32 %v42, %v196
  %v198 = vpop.f32.mrb[0].mxu0
  %199 = vdwg.mxu0
  %200 = vmatprep.subr.mxu0 0.0
  %v201 = vand.u32 %v52, 4294901760
  %v202 = vsub.f32 %v52, %v201
  %v203 = vand.u32 %v202, 4294901760
  %v204 = vsub.f32 %v202, %v203
  %v205 = vand.u32 %v204, 4294901760
  %206 = vmatpush1.xpose.msra.mxu0 %v205
  %207 = vmatprep.subr.mxu0 0.0
  %v208 = vand.u32 %v55, 4294901760
  %v209 = vsub.f32 %v55, %v208
  %v210 = vand.u32 %v209, 4294901760
  %v211 = vsub.f32 %v209, %v210
  %v212 = vand.u32 %v211, 4294901760
  %213 = vmatpush1.xpose.msra.mxu0 %v212
  %214 = vmatprep.subr.mxu0 0.0
  %v215 = vand.u32 %v58, 4294901760
  %v216 = vsub.f32 %v58, %v215
  %v217 = vand.u32 %v216, 4294901760
  %v218 = vsub.f32 %v216, %v217
  %v219 = vand.u32 %v218, 4294901760
  %220 = vmatpush1.xpose.msra.mxu0 %v219
  %221 = vmatprep.subr.mxu0 0.0
  %v222 = vand.u32 %v61, 4294901760
  %v223 = vsub.f32 %v61, %v222
  %v224 = vand.u32 %v223, 4294901760
  %v225 = vsub.f32 %v223, %v224
  %v226 = vand.u32 %v225, 4294901760
  %227 = vmatpush1.xpose.msra.mxu0 %v226
  %228 = vmatprep.subr.mxu0 0.0
  %v229 = vand.u32 %v64, 4294901760
  %v230 = vsub.f32 %v64, %v229
  %v231 = vand.u32 %v230, 4294901760
  %v232 = vsub.f32 %v230, %v231
  %v233 = vand.u32 %v232, 4294901760
  %234 = vmatpush1.xpose.msra.mxu0 %v233
  %235 = vmatprep.subr.mxu0 0.0
  %v236 = vand.u32 %v67, 4294901760
  %v237 = vsub.f32 %v67, %v236
  %v238 = vand.u32 %v237, 4294901760
  %v239 = vsub.f32 %v237, %v238
  %v240 = vand.u32 %v239, 4294901760
  %241 = vmatpush1.xpose.msra.mxu0 %v240
  %242 = vmatprep.subr.mxu0 0.0
  %v243 = vand.u32 %v70, 4294901760
  %v244 = vsub.f32 %v70, %v243
  %v245 = vand.u32 %v244, 4294901760
  %v246 = vsub.f32 %v244, %v245
  %v247 = vand.u32 %v246, 4294901760
  %248 = vmatpush1.xpose.msra.mxu0 %v247
  %249 = vmatprep.subr.mxu0 0.0
  %v250 = vand.u32 %v73, 4294901760
  %v251 = vsub.f32 %v73, %v250
  %v252 = vand.u32 %v251, 4294901760
  %v253 = vsub.f32 %v251, %v252
  %v254 = vand.u32 %v253, 4294901760
  %255 = vmatpush1.xpose.msra.mxu0 %v254
  %256 = vmatprep.subr.mxu0 0.0
  %v257 = vand.u32 %v76, 4294901760
  %v258 = vsub.f32 %v76, %v257
  %v259 = vand.u32 %v258, 4294901760
  %v260 = vsub.f32 %v258, %v259
  %v261 = vand.u32 %v260, 4294901760
  %262 = vmatpush1.xpose.msra.mxu0 %v261
  %263 = vmatprep.subr.mxu0 0.0
  %v264 = vand.u32 %v79, 4294901760
  %v265 = vsub.f32 %v79, %v264
  %v266 = vand.u32 %v265, 4294901760
  %v267 = vsub.f32 %v265, %v266
  %v268 = vand.u32 %v267, 4294901760
  %269 = vmatpush1.xpose.msra.mxu0 %v268
  %270 = vmatprep.subr.mxu0 0.0
  %v271 = vand.u32 %v82, 4294901760
  %v272 = vsub.f32 %v82, %v271
  %v273 = vand.u32 %v272, 4294901760
  %v274 = vsub.f32 %v272, %v273
  %v275 = vand.u32 %v274, 4294901760
  %276 = vmatpush1.xpose.msra.mxu0 %v275
  %277 = vmatprep.subr.mxu0 0.0
  %v278 = vand.u32 %v85, 4294901760
  %v279 = vsub.f32 %v85, %v278
  %v280 = vand.u32 %v279, 4294901760
  %v281 = vsub.f32 %v279, %v280
  %v282 = vand.u32 %v281, 4294901760
  %283 = vmatpush1.xpose.msra.mxu0 %v282
  %284 = vmatprep.subr.mxu0 0.0
  %v285 = vand.u32 %v88, 4294901760
  %v286 = vsub.f32 %v88, %v285
  %v287 = vand.u32 %v286, 4294901760
  %v288 = vsub.f32 %v286, %v287
  %v289 = vand.u32 %v288, 4294901760
  %290 = vmatpush1.xpose.msra.mxu0 %v289
  %291 = vmatprep.subr.mxu0 0.0
  %v292 = vand.u32 %v91, 4294901760
  %v293 = vsub.f32 %v91, %v292
  %v294 = vand.u32 %v293, 4294901760
  %v295 = vsub.f32 %v293, %v294
  %v296 = vand.u32 %v295, 4294901760
  %297 = vmatpush1.xpose.msra.mxu0 %v296
  %298 = vmatprep.subr.mxu0 0.0
  %v299 = vand.u32 %v94, 4294901760
  %v300 = vsub.f32 %v94, %v299
  %v301 = vand.u32 %v300, 4294901760
  %v302 = vsub.f32 %v300, %v301
  %v303 = vand.u32 %v302, 4294901760
  %304 = vmatpush1.xpose.msra.mxu0 %v303
  %305 = vmatprep.subr.mxu0 0.0
  %v306 = vand.u32 %v97, 4294901760
  %v307 = vsub.f32 %v97, %v306
  %v308 = vand.u32 %v307, 4294901760
  %v309 = vsub.f32 %v307, %v308
  %v310 = vand.u32 %v309, 4294901760
  %311 = vmatpush1.xpose.msra.mxu0 %v310
  %312 = vmatprep.subr.mxu0 0.0
  %313 = vmatpush1.xpose.msra.mxu0 0.0
  %314 = vmatprep.subr.mxu0 0.0
  %315 = vmatpush1.xpose.msra.mxu0 0.0
  %316 = vmatprep.subr.mxu0 0.0
  %317 = vmatpush1.xpose.msra.mxu0 0.0
  %318 = vmatprep.subr.mxu0 0.0
  %319 = vmatpush1.xpose.msra.mxu0 0.0
  %320 = vmatprep.subr.mxu0 0.0
  %321 = vmatpush1.xpose.msra.mxu0 0.0
  %322 = vmatprep.subr.mxu0 0.0
  %323 = vmatpush1.xpose.msra.mxu0 0.0
  %324 = vmatprep.subr.mxu0 0.0
  %325 = vmatpush1.xpose.msra.mxu0 0.0
  %326 = vmatprep.subr.mxu0 0.0
  %327 = vmatpush1.xpose.msra.mxu0 0.0
  %328 = vmatprep.subr.mxu0 0.0
  %329 = vmatpush1.xpose.msra.mxu0 0.0
  %330 = vmatprep.subr.mxu0 0.0
  %331 = vmatpush1.xpose.msra.mxu0 0.0
  %332 = vmatprep.subr.mxu0 0.0
  %333 = vmatpush1.xpose.msra.mxu0 0.0
  %334 = vmatprep.subr.mxu0 0.0
  %335 = vmatpush1.xpose.msra.mxu0 0.0
  %336 = vmatprep.subr.mxu0 0.0
  %337 = vmatpush1.xpose.msra.mxu0 0.0
  %338 = vmatprep.subr.mxu0 0.0
  %339 = vmatpush1.xpose.msra.mxu0 0.0
  %340 = vmatprep.subr.mxu0 0.0
  %341 = vmatpush1.xpose.msra.mxu0 0.0
  %342 = vmatprep.subr.mxu0 0.0
  %343 = vmatpush1.xpose.msra.mxu0 0.0
  %344 = vmatprep.mubr.f32.mxu0 0.0
  %v345 = vand.u32 %v46, 4294901760
  %346 = vmatmul.mubr.f32.gmra.mrb[0].mxu0 %v345
  %v347 = vpop.f32.mrb[0].mxu0
  %v348 = vadd.f32 %v187, %v347
  %v349 = vpop.f32.mrb[0].mxu0
  %350 = vmatprep.mubr.f32.mxu0 0.0
  %v351 = vand.u32 %v49, 4294901760
  %352 = vmatmul.mubr.f32.gmra.mrb[0].mxu0 %v351
  %v353 = vpop.f32.mrb[0].mxu0
  %v354 = vadd.f32 %v197, %v353
  %v355 = vpop.f32.mrb[0].mxu0
  %356 = vdwg.mxu0
  %357 = vmatprep.subr.mxu0 0.0
  %v358 = vand.u32 %v52, 4294901760
  %v359 = vsub.f32 %v52, %v358
  %360 = vmatpush1.xpose.msra.mxu0 %v359
  %361 = vmatprep.subr.mxu0 0.0
  %v362 = vand.u32 %v55, 4294901760
  %v363 = vsub.f32 %v55, %v362
  %364 = vmatpush1.xpose.msra.mxu0 %v363
  %365 = vmatprep.subr.mxu0 0.0
  %v366 = vand.u32 %v58, 4294901760
  %v367 = vsub.f32 %v58, %v366
  %368 = vmatpush1.xpose.msra.mxu0 %v367
  %369 = vmatprep.subr.mxu0 0.0
  %v370 = vand.u32 %v61, 4294901760
  %v371 = vsub.f32 %v61, %v370
  %372 = vmatpush1.xpose.msra.mxu0 %v371
  %373 = vmatprep.subr.mxu0 0.0
  %v374 = vand.u32 %v64, 4294901760
  %v375 = vsub.f32 %v64, %v374
  %376 = vmatpush1.xpose.msra.mxu0 %v375
  %377 = vmatprep.subr.mxu0 0.0
  %v378 = vand.u32 %v67, 4294901760
  %v379 = vsub.f32 %v67, %v378
  %380 = vmatpush1.xpose.msra.mxu0 %v379
  %381 = vmatprep.subr.mxu0 0.0
  %v382 = vand.u32 %v70, 4294901760
  %v383 = vsub.f32 %v70, %v382
  %384 = vmatpush1.xpose.msra.mxu0 %v383
  %385 = vmatprep.subr.mxu0 0.0
  %v386 = vand.u32 %v73, 4294901760
  %v387 = vsub.f32 %v73, %v386
  %388 = vmatpush1.xpose.msra.mxu0 %v387
  %389 = vmatprep.subr.mxu0 0.0
  %v390 = vand.u32 %v76, 4294901760
  %v391 = vsub.f32 %v76, %v390
  %392 = vmatpush1.xpose.msra.mxu0 %v391
  %393 = vmatprep.subr.mxu0 0.0
  %v394 = vand.u32 %v79, 4294901760
  %v395 = vsub.f32 %v79, %v394
  %396 = vmatpush1.xpose.msra.mxu0 %v395
  %397 = vmatprep.subr.mxu0 0.0
  %v398 = vand.u32 %v82, 4294901760
  %v399 = vsub.f32 %v82, %v398
  %400 = vmatpush1.xpose.msra.mxu0 %v399
  %401 = vmatprep.subr.mxu0 0.0
  %v402 = vand.u32 %v85, 4294901760
  %v403 = vsub.f32 %v85, %v402
  %404 = vmatpush1.xpose.msra.mxu0 %v403
  %405 = vmatprep.subr.mxu0 0.0
  %v406 = vand.u32 %v88, 4294901760
  %v407 = vsub.f32 %v88, %v406
  %408 = vmatpush1.xpose.msra.mxu0 %v407
  %409 = vmatprep.subr.mxu0 0.0
  %v410 = vand.u32 %v91, 4294901760
  %v411 = vsub.f32 %v91, %v410
  %412 = vmatpush1.xpose.msra.mxu0 %v411
  %413 = vmatprep.subr.mxu0 0.0
  %v414 = vand.u32 %v94, 4294901760
  %v415 = vsub.f32 %v94, %v414
  %416 = vmatpush1.xpose.msra.mxu0 %v415
  %417 = vmatprep.subr.mxu0 0.0
  %v418 = vand.u32 %v97, 4294901760
  %v419 = vsub.f32 %v97, %v418
  %420 = vmatpush1.xpose.msra.mxu0 %v419
  %421 = vmatprep.subr.mxu0 0.0
  %422 = vmatpush1.xpose.msra.mxu0 0.0
  %423 = vmatprep.subr.mxu0 0.0
  %424 = vmatpush1.xpose.msra.mxu0 0.0
  %425 = vmatprep.subr.mxu0 0.0
  %426 = vmatpush1.xpose.msra.mxu0 0.0
  %427 = vmatprep.subr.mxu0 0.0
  %428 = vmatpush1.xpose.msra.mxu0 0.0
  %429 = vmatprep.subr.mxu0 0.0
  %430 = vmatpush1.xpose.msra.mxu0 0.0
  %431 = vmatprep.subr.mxu0 0.0
  %432 = vmatpush1.xpose.msra.mxu0 0.0
  %433 = vmatprep.subr.mxu0 0.0
  %434 = vmatpush1.xpose.msra.mxu0 0.0
  %435 = vmatprep.subr.mxu0 0.0
  %436 = vmatpush1.xpose.msra.mxu0 0.0
  %437 = vmatprep.subr.mxu0 0.0
  %438 = vmatpush1.xpose.msra.mxu0 0.0
  %439 = vmatprep.subr.mxu0 0.0
  %440 = vmatpush1.xpose.msra.mxu0 0.0
  %441 = vmatprep.subr.mxu0 0.0
  %442 = vmatpush1.xpose.msra.mxu0 0.0
  %443 = vmatprep.subr.mxu0 0.0
  %444 = vmatpush1.xpose.msra.mxu0 0.0
  %445 = vmatprep.subr.mxu0 0.0
  %446 = vmatpush1.xpose.msra.mxu0 0.0
  %447 = vmatprep.subr.mxu0 0.0
  %448 = vmatpush1.xpose.msra.mxu0 0.0
  %449 = vmatprep.subr.mxu0 0.0
  %450 = vmatpush1.xpose.msra.mxu0 0.0
  %451 = vmatprep.subr.mxu0 0.0
  %452 = vmatpush1.xpose.msra.mxu0 0.0
  %453 = vmatprep.mubr.f32.mxu0 0.0
  %v454 = vand.u32 %v46, 4294901760
  %v455 = vsub.f32 %v46, %v454
  %456 = vmatmul.mubr.f32.gmra.mrb[0].mxu0 %v455
  %v457 = vpop.f32.mrb[0].mxu0
  %v458 = vadd.f32 %v348, %v457
  %v459 = vpop.f32.mrb[0].mxu0
  %460 = vmatprep.mubr.f32.mxu0 0.0
  %v461 = vand.u32 %v49, 4294901760
  %v462 = vsub.f32 %v49, %v461
  %463 = vmatmul.mubr.f32.gmra.mrb[0].mxu0 %v462
  %v464 = vpop.f32.mrb[0].mxu0
  %v465 = vadd.f32 %v354, %v464
  %v466 = vpop.f32.mrb[0].mxu0
  %467 = vdwg.mxu0
  %468 = vmatprep.subr.mxu0 0.0
  %v469 = vand.u32 %v52, 4294901760
  %470 = vmatpush1.xpose.msra.mxu0 %v469
  %471 = vmatprep.subr.mxu0 0.0
  %v472 = vand.u32 %v55, 4294901760
  %473 = vmatpush1.xpose.msra.mxu0 %v472
  %474 = vmatprep.subr.mxu0 0.0
  %v475 = vand.u32 %v58, 4294901760
  %476 = vmatpush1.xpose.msra.mxu0 %v475
  %477 = vmatprep.subr.mxu0 0.0
  %v478 = vand.u32 %v61, 4294901760
  %479 = vmatpush1.xpose.msra.mxu0 %v478
  %480 = vmatprep.subr.mxu0 0.0
  %v481 = vand.u32 %v64, 4294901760
  %482 = vmatpush1.xpose.msra.mxu0 %v481
  %483 = vmatprep.subr.mxu0 0.0
  %v484 = vand.u32 %v67, 4294901760
  %485 = vmatpush1.xpose.msra.mxu0 %v484
  %486 = vmatprep.subr.mxu0 0.0
  %v487 = vand.u32 %v70, 4294901760
  %488 = vmatpush1.xpose.msra.mxu0 %v487
  %489 = vmatprep.subr.mxu0 0.0
  %v490 = vand.u32 %v73, 4294901760
  %491 = vmatpush1.xpose.msra.mxu0 %v490
  %492 = vmatprep.subr.mxu0 0.0
  %v493 = vand.u32 %v76, 4294901760
  %494 = vmatpush1.xpose.msra.mxu0 %v493
  %495 = vmatprep.subr.mxu0 0.0
  %v496 = vand.u32 %v79, 4294901760
  %497 = vmatpush1.xpose.msra.mxu0 %v496
  %498 = vmatprep.subr.mxu0 0.0
  %v499 = vand.u32 %v82, 4294901760
  %500 = vmatpush1.xpose.msra.mxu0 %v499
  %501 = vmatprep.subr.mxu0 0.0
  %v502 = vand.u32 %v85, 4294901760
  %503 = vmatpush1.xpose.msra.mxu0 %v502
  %504 = vmatprep.subr.mxu0 0.0
  %v505 = vand.u32 %v88, 4294901760
  %506 = vmatpush1.xpose.msra.mxu0 %v505
  %507 = vmatprep.subr.mxu0 0.0
  %v508 = vand.u32 %v91, 4294901760
  %509 = vmatpush1.xpose.msra.mxu0 %v508
  %510 = vmatprep.subr.mxu0 0.0
  %v511 = vand.u32 %v94, 4294901760
  %512 = vmatpush1.xpose.msra.mxu0 %v511
  %513 = vmatprep.subr.mxu0 0.0
  %v514 = vand.u32 %v97, 4294901760
  %515 = vmatpush1.xpose.msra.mxu0 %v514
  %516 = vmatprep.subr.mxu0 0.0
  %517 = vmatpush1.xpose.msra.mxu0 0.0
  %518 = vmatprep.subr.mxu0 0.0
  %519 = vmatpush1.xpose.msra.mxu0 0.0
  %520 = vmatprep.subr.mxu0 0.0
  %521 = vmatpush1.xpose.msra.mxu0 0.0
  %522 = vmatprep.subr.mxu0 0.0
  %523 = vmatpush1.xpose.msra.mxu0 0.0
  %524 = vmatprep.subr.mxu0 0.0
  %525 = vmatpush1.xpose.msra.mxu0 0.0
  %526 = vmatprep.subr.mxu0 0.0
  %527 = vmatpush1.xpose.msra.mxu0 0.0
  %528 = vmatprep.subr.mxu0 0.0
  %529 = vmatpush1.xpose.msra.mxu0 0.0
  %530 = vmatprep.subr.mxu0 0.0
  %531 = vmatpush1.xpose.msra.mxu0 0.0
  %532 = vmatprep.subr.mxu0 0.0
  %533 = vmatpush1.xpose.msra.mxu0 0.0
  %534 = vmatprep.subr.mxu0 0.0
  %535 = vmatpush1.xpose.msra.mxu0 0.0
  %536 = vmatprep.subr.mxu0 0.0
  %537 = vmatpush1.xpose.msra.mxu0 0.0
  %538 = vmatprep.subr.mxu0 0.0
  %539 = vmatpush1.xpose.msra.mxu0 0.0
  %540 = vmatprep.subr.mxu0 0.0
  %541 = vmatpush1.xpose.msra.mxu0 0.0
  %542 = vmatprep.subr.mxu0 0.0
  %543 = vmatpush1.xpose.msra.mxu0 0.0
  %544 = vmatprep.subr.mxu0 0.0
  %545 = vmatpush1.xpose.msra.mxu0 0.0
  %546 = vmatprep.subr.mxu0 0.0
  %547 = vmatpush1.xpose.msra.mxu0 0.0
  %548 = vmatprep.mubr.f32.mxu0 0.0
  %v549 = vand.u32 %v46, 4294901760
  %v550 = vsub.f32 %v46, %v549
  %v551 = vand.u32 %v550, 4294901760
  %552 = vmatmul.mubr.f32.gmra.mrb[0].mxu0 %v551
  %v553 = vpop.f32.mrb[0].mxu0
  %v554 = vadd.f32 %v458, %v553
  %v555 = vpop.f32.mrb[0].mxu0
  %556 = vmatprep.mubr.f32.mxu0 0.0
  %v557 = vand.u32 %v49, 4294901760
  %v558 = vsub.f32 %v49, %v557
  %v559 = vand.u32 %v558, 4294901760
  %560 = vmatmul.mubr.f32.gmra.mrb[0].mxu0 %v559
  %v561 = vpop.f32.mrb[0].mxu0
  %v562 = vadd.f32 %v465, %v561
  %v563 = vpop.f32.mrb[0].mxu0
  %564 = vdwg.mxu0
  %565 = vmatprep.subr.mxu0 0.0
  %v566 = vand.u32 %v52, 4294901760
  %v567 = vsub.f32 %v52, %v566
  %v568 = vand.u32 %v567, 4294901760
  %569 = vmatpush1.xpose.msra.mxu0 %v568
  %570 = vmatprep.subr.mxu0 0.0
  %v571 = vand.u32 %v55, 4294901760
  %v572 = vsub.f32 %v55, %v571
  %v573 = vand.u32 %v572, 4294901760
  %574 = vmatpush1.xpose.msra.mxu0 %v573
  %575 = vmatprep.subr.mxu0 0.0
  %v576 = vand.u32 %v58, 4294901760
  %v577 = vsub.f32 %v58, %v576
  %v578 = vand.u32 %v577, 4294901760
  %579 = vmatpush1.xpose.msra.mxu0 %v578
  %580 = vmatprep.subr.mxu0 0.0
  %v581 = vand.u32 %v61, 4294901760
  %v582 = vsub.f32 %v61, %v581
  %v583 = vand.u32 %v582, 4294901760
  %584 = vmatpush1.xpose.msra.mxu0 %v583
  %585 = vmatprep.subr.mxu0 0.0
  %v586 = vand.u32 %v64, 4294901760
  %v587 = vsub.f32 %v64, %v586
  %v588 = vand.u32 %v587, 4294901760
  %589 = vmatpush1.xpose.msra.mxu0 %v588
  %590 = vmatprep.subr.mxu0 0.0
  %v591 = vand.u32 %v67, 4294901760
  %v592 = vsub.f32 %v67, %v591
  %v593 = vand.u32 %v592, 4294901760
  %594 = vmatpush1.xpose.msra.mxu0 %v593
  %595 = vmatprep.subr.mxu0 0.0
  %v596 = vand.u32 %v70, 4294901760
  %v597 = vsub.f32 %v70, %v596
  %v598 = vand.u32 %v597, 4294901760
  %599 = vmatpush1.xpose.msra.mxu0 %v598
  %600 = vmatprep.subr.mxu0 0.0
  %v601 = vand.u32 %v73, 4294901760
  %v602 = vsub.f32 %v73, %v601
  %v603 = vand.u32 %v602, 4294901760
  %604 = vmatpush1.xpose.msra.mxu0 %v603
  %605 = vmatprep.subr.mxu0 0.0
  %v606 = vand.u32 %v76, 4294901760
  %v607 = vsub.f32 %v76, %v606
  %v608 = vand.u32 %v607, 4294901760
  %609 = vmatpush1.xpose.msra.mxu0 %v608
  %610 = vmatprep.subr.mxu0 0.0
  %v611 = vand.u32 %v79, 4294901760
  %v612 = vsub.f32 %v79, %v611
  %v613 = vand.u32 %v612, 4294901760
  %614 = vmatpush1.xpose.msra.mxu0 %v613
  %615 = vmatprep.subr.mxu0 0.0
  %v616 = vand.u32 %v82, 4294901760
  %v617 = vsub.f32 %v82, %v616
  %v618 = vand.u32 %v617, 4294901760
  %619 = vmatpush1.xpose.msra.mxu0 %v618
  %620 = vmatprep.subr.mxu0 0.0
  %v621 = vand.u32 %v85, 4294901760
  %v622 = vsub.f32 %v85, %v621
  %v623 = vand.u32 %v622, 4294901760
  %624 = vmatpush1.xpose.msra.mxu0 %v623
  %625 = vmatprep.subr.mxu0 0.0
  %v626 = vand.u32 %v88, 4294901760
  %v627 = vsub.f32 %v88, %v626
  %v628 = vand.u32 %v627, 4294901760
  %629 = vmatpush1.xpose.msra.mxu0 %v628
  %630 = vmatprep.subr.mxu0 0.0
  %v631 = vand.u32 %v91, 4294901760
  %v632 = vsub.f32 %v91, %v631
  %v633 = vand.u32 %v632, 4294901760
  %634 = vmatpush1.xpose.msra.mxu0 %v633
  %635 = vmatprep.subr.mxu0 0.0
  %v636 = vand.u32 %v94, 4294901760
  %v637 = vsub.f32 %v94, %v636
  %v638 = vand.u32 %v637, 4294901760
  %639 = vmatpush1.xpose.msra.mxu0 %v638
  %640 = vmatprep.subr.mxu0 0.0
  %v641 = vand.u32 %v97, 4294901760
  %v642 = vsub.f32 %v97, %v641
  %v643 = vand.u32 %v642, 4294901760
  %644 = vmatpush1.xpose.msra.mxu0 %v643
  %645 = vmatprep.subr.mxu0 0.0
  %646 = vmatpush1.xpose.msra.mxu0 0.0
  %647 = vmatprep.subr.mxu0 0.0
  %648 = vmatpush1.xpose.msra.mxu0 0.0
  %649 = vmatprep.subr.mxu0 0.0
  %650 = vmatpush1.xpose.msra.mxu0 0.0
  %651 = vmatprep.subr.mxu0 0.0
  %652 = vmatpush1.xpose.msra.mxu0 0.0
  %653 = vmatprep.subr.mxu0 0.0
  %654 = vmatpush1.xpose.msra.mxu0 0.0
  %655 = vmatprep.subr.mxu0 0.0
  %656 = vmatpush1.xpose.msra.mxu0 0.0
  %657 = vmatprep.subr.mxu0 0.0
  %658 = vmatpush1.xpose.msra.mxu0 0.0
  %659 = vmatprep.subr.mxu0 0.0
  %660 = vmatpush1.xpose.msra.mxu0 0.0
  %661 = vmatprep.subr.mxu0 0.0
  %662 = vmatpush1.xpose.msra.mxu0 0.0
  %663 = vmatprep.subr.mxu0 0.0
  %664 = vmatpush1.xpose.msra.mxu0 0.0
  %665 = vmatprep.subr.mxu0 0.0
  %666 = vmatpush1.xpose.msra.mxu0 0.0
  %667 = vmatprep.subr.mxu0 0.0
  %668 = vmatpush1.xpose.msra.mxu0 0.0
  %669 = vmatprep.subr.mxu0 0.0
  %670 = vmatpush1.xpose.msra.mxu0 0.0
  %671 = vmatprep.subr.mxu0 0.0
  %672 = vmatpush1.xpose.msra.mxu0 0.0
  %673 = vmatprep.subr.mxu0 0.0
  %674 = vmatpush1.xpose.msra.mxu0 0.0
  %675 = vmatprep.subr.mxu0 0.0
  %676 = vmatpush1.xpose.msra.mxu0 0.0
  %677 = vmatprep.mubr.f32.mxu0 0.0
  %v678 = vand.u32 %v46, 4294901760
  %679 = vmatmul.mubr.f32.gmra.mrb[0].mxu0 %v678
  %v680 = vpop.f32.mrb[0].mxu0
  %v681 = vadd.f32 %v554, %v680
  %v682 = vpop.f32.mrb[0].mxu0
  %683 = vmatprep.mubr.f32.mxu0 0.0
  %v684 = vand.u32 %v49, 4294901760
  %685 = vmatmul.mubr.f32.gmra.mrb[0].mxu0 %v684
  %v686 = vpop.f32.mrb[0].mxu0
  %v687 = vadd.f32 %v562, %v686
  %v688 = vpop.f32.mrb[0].mxu0
  %689 = vdwg.mxu0
  %690 = vmatprep.subr.mxu0 0.0
  %v691 = vand.u32 %v52, 4294901760
  %692 = vmatpush1.xpose.msra.mxu0 %v691
  %693 = vmatprep.subr.mxu0 0.0
  %v694 = vand.u32 %v55, 4294901760
  %695 = vmatpush1.xpose.msra.mxu0 %v694
  %696 = vmatprep.subr.mxu0 0.0
  %v697 = vand.u32 %v58, 4294901760
  %698 = vmatpush1.xpose.msra.mxu0 %v697
  %699 = vmatprep.subr.mxu0 0.0
  %v700 = vand.u32 %v61, 4294901760
  %701 = vmatpush1.xpose.msra.mxu0 %v700
  %702 = vmatprep.subr.mxu0 0.0
  %v703 = vand.u32 %v64, 4294901760
  %704 = vmatpush1.xpose.msra.mxu0 %v703
  %705 = vmatprep.subr.mxu0 0.0
  %v706 = vand.u32 %v67, 4294901760
  %707 = vmatpush1.xpose.msra.mxu0 %v706
  %708 = vmatprep.subr.mxu0 0.0
  %v709 = vand.u32 %v70, 4294901760
  %710 = vmatpush1.xpose.msra.mxu0 %v709
  %711 = vmatprep.subr.mxu0 0.0
  %v712 = vand.u32 %v73, 4294901760
  %713 = vmatpush1.xpose.msra.mxu0 %v712
  %714 = vmatprep.subr.mxu0 0.0
  %v715 = vand.u32 %v76, 4294901760
  %716 = vmatpush1.xpose.msra.mxu0 %v715
  %717 = vmatprep.subr.mxu0 0.0
  %v718 = vand.u32 %v79, 4294901760
  %719 = vmatpush1.xpose.msra.mxu0 %v718
  %720 = vmatprep.subr.mxu0 0.0
  %v721 = vand.u32 %v82, 4294901760
  %722 = vmatpush1.xpose.msra.mxu0 %v721
  %723 = vmatprep.subr.mxu0 0.0
  %v724 = vand.u32 %v85, 4294901760
  %725 = vmatpush1.xpose.msra.mxu0 %v724
  %726 = vmatprep.subr.mxu0 0.0
  %v727 = vand.u32 %v88, 4294901760
  %728 = vmatpush1.xpose.msra.mxu0 %v727
  %729 = vmatprep.subr.mxu0 0.0
  %v730 = vand.u32 %v91, 4294901760
  %731 = vmatpush1.xpose.msra.mxu0 %v730
  %732 = vmatprep.subr.mxu0 0.0
  %v733 = vand.u32 %v94, 4294901760
  %734 = vmatpush1.xpose.msra.mxu0 %v733
  %735 = vmatprep.subr.mxu0 0.0
  %v736 = vand.u32 %v97, 4294901760
  %737 = vmatpush1.xpose.msra.mxu0 %v736
  %738 = vmatprep.subr.mxu0 0.0
  %739 = vmatpush1.xpose.msra.mxu0 0.0
  %740 = vmatprep.subr.mxu0 0.0
  %741 = vmatpush1.xpose.msra.mxu0 0.0
  %742 = vmatprep.subr.mxu0 0.0
  %743 = vmatpush1.xpose.msra.mxu0 0.0
  %744 = vmatprep.subr.mxu0 0.0
  %745 = vmatpush1.xpose.msra.mxu0 0.0
  %746 = vmatprep.subr.mxu0 0.0
  %747 = vmatpush1.xpose.msra.mxu0 0.0
  %748 = vmatprep.subr.mxu0 0.0
  %749 = vmatpush1.xpose.msra.mxu0 0.0
  %750 = vmatprep.subr.mxu0 0.0
  %751 = vmatpush1.xpose.msra.mxu0 0.0
  %752 = vmatprep.subr.mxu0 0.0
  %753 = vmatpush1.xpose.msra.mxu0 0.0
  %754 = vmatprep.subr.mxu0 0.0
  %755 = vmatpush1.xpose.msra.mxu0 0.0
  %756 = vmatprep.subr.mxu0 0.0
  %757 = vmatpush1.xpose.msra.mxu0 0.0
  %758 = vmatprep.subr.mxu0 0.0
  %759 = vmatpush1.xpose.msra.mxu0 0.0
  %760 = vmatprep.subr.mxu0 0.0
  %761 = vmatpush1.xpose.msra.mxu0 0.0
  %762 = vmatprep.subr.mxu0 0.0
  %763 = vmatpush1.xpose.msra.mxu0 0.0
  %764 = vmatprep.subr.mxu0 0.0
  %765 = vmatpush1.xpose.msra.mxu0 0.0
  %766 = vmatprep.subr.mxu0 0.0
  %767 = vmatpush1.xpose.msra.mxu0 0.0
  %768 = vmatprep.subr.mxu0 0.0
  %769 = vmatpush1.xpose.msra.mxu0 0.0
  %770 = vmatprep.mubr.f32.mxu0 0.0
  %v771 = vand.u32 %v46, 4294901760
  %772 = vmatmul.mubr.f32.gmra.mrb[0].mxu0 %v771
  %v773 = vpop.f32.mrb[0].mxu0
  %v774 = vadd.f32 %v681, %v773
  %v775 = vpop.f32.mrb[0].mxu0
  %776 = vmatprep.mubr.f32.mxu0 0.0
  %v777 = vand.u32 %v49, 4294901760
  %778 = vmatmul.mubr.f32.gmra.mrb[0].mxu0 %v777
  %v779 = vpop.f32.mrb[0].mxu0
  %v780 = vadd.f32 %v687, %v779
  %v781 = vpop.f32.mrb[0].mxu0
  %782 = vdwg.mxu0
  %v783 = vmul.f32 %v774, 0.01
  %v784 = vmul.f32 %v780, 0.01
  %v785 = vmax.f32 %v774, %v783
  %v786 = vmax.f32 %v780, %v784
  %s787 = scalar_lea.vmem %s1, 16
  %v788 = vld [vmem:[%s787] sm:$0xff]
  %v789 = vld [vmem:[%s787 + $0x8] sm:$0xff]
  %s790 = scalar_lea.vmem %s2, 16
  %v791 = vld [vmem:[%s790] sm:$0xff]
  %v792 = vld [vmem:[%s790 + $0x8] sm:$0xff]
  %794 = vset.pattern.permute.xlu0 0
  %795 = vperm.xlu0 %794, %v791
  %v796 = vpop.permute.xlu0 %795
  %799 = vset.pattern.permute.xlu0 0
  %800 = vperm.xlu0 %799, %v792
  %v801 = vpop.permute.xlu0 %800
  %vm803 = vcmask 130048
  %v805 = vsel %vm803, %v788, 0
  %v808 = vsel %vm803, %v789, 0
  %810 = vmatprep.subr.mxu0 0.0
  %v811 = vand.u32 %v785, 4294901760
  %812 = vmatpush1.msra.mxu0 %v811
  %813 = vmatprep.subr.mxu0 0.0
  %v814 = vand.u32 %v786, 4294901760
  %815 = vmatpush1.msra.mxu0 %v814
  %816 = vmatprep.subr.mxu0 0.0
  %817 = vmatpush1.msra.mxu0 0.0
  %818 = vmatprep.subr.mxu0 0.0
  %819 = vmatpush1.msra.mxu0 0.0
  %820 = vmatprep.subr.mxu0 0.0
  %821 = vmatpush1.msra.mxu0 0.0
  %822 = vmatprep.subr.mxu0 0.0
  %823 = vmatpush1.msra.mxu0 0.0
  %824 = vmatprep.subr.mxu0 0.0
  %825 = vmatpush1.msra.mxu0 0.0
  %826 = vmatprep.subr.mxu0 0.0
  %827 = vmatpush1.msra.mxu0 0.0
  %828 = vmatprep.subr.mxu0 0.0
  %829 = vmatpush1.msra.mxu0 0.0
  %830 = vmatprep.subr.mxu0 0.0
  %831 = vmatpush1.msra.mxu0 0.0
  %832 = vmatprep.subr.mxu0 0.0
  %833 = vmatpush1.msra.mxu0 0.0
  %834 = vmatprep.subr.mxu0 0.0
  %835 = vmatpush1.msra.mxu0 0.0
  %836 = vmatprep.subr.mxu0 0.0
  %837 = vmatpush1.msra.mxu0 0.0
  %838 = vmatprep.subr.mxu0 0.0
  %839 = vmatpush1.msra.mxu0 0.0
  %840 = vmatprep.subr.mxu0 0.0
  %841 = vmatpush1.msra.mxu0 0.0
  %842 = vmatprep.subr.mxu0 0.0
  %843 = vmatpush1.msra.mxu0 0.0
  %844 = vmatprep.subr.mxu0 0.0
  %845 = vmatpush1.msra.mxu0 0.0
  %846 = vmatprep.subr.mxu0 0.0
  %847 = vmatpush1.msra.mxu0 0.0
  %848 = vmatprep.subr.mxu0 0.0
  %849 = vmatpush1.msra.mxu0 0.0
  %850 = vmatprep.subr.mxu0 0.0
  %851 = vmatpush1.msra.mxu0 0.0
  %852 = vmatprep.subr.mxu0 0.0
  %853 = vmatpush1.msra.mxu0 0.0
  %854 = vmatprep.subr.mxu0 0.0
  %855 = vmatpush1.msra.mxu0 0.0
  %856 = vmatprep.subr.mxu0 0.0
  %857 = vmatpush1.msra.mxu0 0.0
  %858 = vmatprep.subr.mxu0 0.0
  %859 = vmatpush1.msra.mxu0 0.0
  %860 = vmatprep.subr.mxu0 0.0
  %861 = vmatpush1.msra.mxu0 0.0
  %862 = vmatprep.subr.mxu0 0.0
  %863 = vmatpush1.msra.mxu0 0.0
  %864 = vmatprep.subr.mxu0 0.0
  %865 = vmatpush1.msra.mxu0 0.0
  %866 = vmatprep.subr.mxu0 0.0
  %867 = vmatpush1.msra.mxu0 0.0
  %868 = vmatprep.subr.mxu0 0.0
  %869 = vmatpush1.msra.mxu0 0.0
  %870 = vmatprep.subr.mxu0 0.0
  %871 = vmatpush1.msra.mxu0 0.0
  %872 = vmatprep.subr.mxu0 0.0
  %873 = vmatpush1.msra.mxu0 0.0
  %874 = vmatprep.subr.mxu0 0.0
  %875 = vmatpush1.msra.mxu0 0.0
  %876 = vmatprep.mubr.f32.mxu0 0.0
  %v877 = vand.u32 %v805, 4294901760
  %v878 = vsub.f32 %v805, %v877
  %v879 = vand.u32 %v878, 4294901760
  %v880 = vsub.f32 %v878, %v879
  %v881 = vand.u32 %v880, 4294901760
  %882 = vmatmul.mubr.f32.gmra.mrb[0].mxu0 %v881
  %v883 = vpop.f32.mrb[0].mxu0
  %v884 = vadd.f32 %v796, %v883
  %v885 = vpop.f32.mrb[0].mxu0
  %886 = vmatprep.mubr.f32.mxu0 0.0
  %v887 = vand.u32 %v808, 4294901760
  %v888 = vsub.f32 %v808, %v887
  %v889 = vand.u32 %v888, 4294901760
  %v890 = vsub.f32 %v888, %v889
  %v891 = vand.u32 %v890, 4294901760
  %892 = vmatmul.mubr.f32.gmra.mrb[0].mxu0 %v891
  %v893 = vpop.f32.mrb[0].mxu0
  %v894 = vadd.f32 %v801, %v893
  %v895 = vpop.f32.mrb[0].mxu0
  %896 = vdwg.mxu0
  %897 = vmatprep.subr.mxu0 0.0
  %v898 = vand.u32 %v785, 4294901760
  %v899 = vsub.f32 %v785, %v898
  %v900 = vand.u32 %v899, 4294901760
  %v901 = vsub.f32 %v899, %v900
  %v902 = vand.u32 %v901, 4294901760
  %903 = vmatpush1.msra.mxu0 %v902
  %904 = vmatprep.subr.mxu0 0.0
  %v905 = vand.u32 %v786, 4294901760
  %v906 = vsub.f32 %v786, %v905
  %v907 = vand.u32 %v906, 4294901760
  %v908 = vsub.f32 %v906, %v907
  %v909 = vand.u32 %v908, 4294901760
  %910 = vmatpush1.msra.mxu0 %v909
  %911 = vmatprep.subr.mxu0 0.0
  %912 = vmatpush1.msra.mxu0 0.0
  %913 = vmatprep.subr.mxu0 0.0
  %914 = vmatpush1.msra.mxu0 0.0
  %915 = vmatprep.subr.mxu0 0.0
  %916 = vmatpush1.msra.mxu0 0.0
  %917 = vmatprep.subr.mxu0 0.0
  %918 = vmatpush1.msra.mxu0 0.0
  %919 = vmatprep.subr.mxu0 0.0
  %920 = vmatpush1.msra.mxu0 0.0
  %921 = vmatprep.subr.mxu0 0.0
  %922 = vmatpush1.msra.mxu0 0.0
  %923 = vmatprep.subr.mxu0 0.0
  %924 = vmatpush1.msra.mxu0 0.0
  %925 = vmatprep.subr.mxu0 0.0
  %926 = vmatpush1.msra.mxu0 0.0
  %927 = vmatprep.subr.mxu0 0.0
  %928 = vmatpush1.msra.mxu0 0.0
  %929 = vmatprep.subr.mxu0 0.0
  %930 = vmatpush1.msra.mxu0 0.0
  %931 = vmatprep.subr.mxu0 0.0
  %932 = vmatpush1.msra.mxu0 0.0
  %933 = vmatprep.subr.mxu0 0.0
  %934 = vmatpush1.msra.mxu0 0.0
  %935 = vmatprep.subr.mxu0 0.0
  %936 = vmatpush1.msra.mxu0 0.0
  %937 = vmatprep.subr.mxu0 0.0
  %938 = vmatpush1.msra.mxu0 0.0
  %939 = vmatprep.subr.mxu0 0.0
  %940 = vmatpush1.msra.mxu0 0.0
  %941 = vmatprep.subr.mxu0 0.0
  %942 = vmatpush1.msra.mxu0 0.0
  %943 = vmatprep.subr.mxu0 0.0
  %944 = vmatpush1.msra.mxu0 0.0
  %945 = vmatprep.subr.mxu0 0.0
  %946 = vmatpush1.msra.mxu0 0.0
  %947 = vmatprep.subr.mxu0 0.0
  %948 = vmatpush1.msra.mxu0 0.0
  %949 = vmatprep.subr.mxu0 0.0
  %950 = vmatpush1.msra.mxu0 0.0
  %951 = vmatprep.subr.mxu0 0.0
  %952 = vmatpush1.msra.mxu0 0.0
  %953 = vmatprep.subr.mxu0 0.0
  %954 = vmatpush1.msra.mxu0 0.0
  %955 = vmatprep.subr.mxu0 0.0
  %956 = vmatpush1.msra.mxu0 0.0
  %957 = vmatprep.subr.mxu0 0.0
  %958 = vmatpush1.msra.mxu0 0.0
  %959 = vmatprep.subr.mxu0 0.0
  %960 = vmatpush1.msra.mxu0 0.0
  %961 = vmatprep.subr.mxu0 0.0
  %962 = vmatpush1.msra.mxu0 0.0
  %963 = vmatprep.subr.mxu0 0.0
  %964 = vmatpush1.msra.mxu0 0.0
  %965 = vmatprep.subr.mxu0 0.0
  %966 = vmatpush1.msra.mxu0 0.0
  %967 = vmatprep.subr.mxu0 0.0
  %968 = vmatpush1.msra.mxu0 0.0
  %969 = vmatprep.subr.mxu0 0.0
  %970 = vmatpush1.msra.mxu0 0.0
  %971 = vmatprep.mubr.f32.mxu0 0.0
  %v972 = vand.u32 %v805, 4294901760
  %973 = vmatmul.mubr.f32.gmra.mrb[0].mxu0 %v972
  %v974 = vpop.f32.mrb[0].mxu0
  %v975 = vadd.f32 %v884, %v974
  %v976 = vpop.f32.mrb[0].mxu0
  %977 = vmatprep.mubr.f32.mxu0 0.0
  %v978 = vand.u32 %v808, 4294901760
  %979 = vmatmul.mubr.f32.gmra.mrb[0].mxu0 %v978
  %v980 = vpop.f32.mrb[0].mxu0
  %v981 = vadd.f32 %v894, %v980
  %v982 = vpop.f32.mrb[0].mxu0
  %983 = vdwg.mxu0
  %984 = vmatprep.subr.mxu0 0.0
  %v985 = vand.u32 %v785, 4294901760
  %v986 = vsub.f32 %v785, %v985
  %987 = vmatpush1.msra.mxu0 %v986
  %988 = vmatprep.subr.mxu0 0.0
  %v989 = vand.u32 %v786, 4294901760
  %v990 = vsub.f32 %v786, %v989
  %991 = vmatpush1.msra.mxu0 %v990
  %992 = vmatprep.subr.mxu0 0.0
  %993 = vmatpush1.msra.mxu0 0.0
  %994 = vmatprep.subr.mxu0 0.0
  %995 = vmatpush1.msra.mxu0 0.0
  %996 = vmatprep.subr.mxu0 0.0
  %997 = vmatpush1.msra.mxu0 0.0
  %998 = vmatprep.subr.mxu0 0.0
  %999 = vmatpush1.msra.mxu0 0.0
  %1000 = vmatprep.subr.mxu0 0.0
  %1001 = vmatpush1.msra.mxu0 0.0
  %1002 = vmatprep.subr.mxu0 0.0
  %1003 = vmatpush1.msra.mxu0 0.0
  %1004 = vmatprep.subr.mxu0 0.0
  %1005 = vmatpush1.msra.mxu0 0.0
  %1006 = vmatprep.subr.mxu0 0.0
  %1007 = vmatpush1.msra.mxu0 0.0
  %1008 = vmatprep.subr.mxu0 0.0
  %1009 = vmatpush1.msra.mxu0 0.0
  %1010 = vmatprep.subr.mxu0 0.0
  %1011 = vmatpush1.msra.mxu0 0.0
  %1012 = vmatprep.subr.mxu0 0.0
  %1013 = vmatpush1.msra.mxu0 0.0
  %1014 = vmatprep.subr.mxu0 0.0
  %1015 = vmatpush1.msra.mxu0 0.0
  %1016 = vmatprep.subr.mxu0 0.0
  %1017 = vmatpush1.msra.mxu0 0.0
  %1018 = vmatprep.subr.mxu0 0.0
  %1019 = vmatpush1.msra.mxu0 0.0
  %1020 = vmatprep.subr.mxu0 0.0
  %1021 = vmatpush1.msra.mxu0 0.0
  %1022 = vmatprep.subr.mxu0 0.0
  %1023 = vmatpush1.msra.mxu0 0.0
  %1024 = vmatprep.subr.mxu0 0.0
  %1025 = vmatpush1.msra.mxu0 0.0
  %1026 = vmatprep.subr.mxu0 0.0
  %1027 = vmatpush1.msra.mxu0 0.0
  %1028 = vmatprep.subr.mxu0 0.0
  %1029 = vmatpush1.msra.mxu0 0.0
  %1030 = vmatprep.subr.mxu0 0.0
  %1031 = vmatpush1.msra.mxu0 0.0
  %1032 = vmatprep.subr.mxu0 0.0
  %1033 = vmatpush1.msra.mxu0 0.0
  %1034 = vmatprep.subr.mxu0 0.0
  %1035 = vmatpush1.msra.mxu0 0.0
  %1036 = vmatprep.subr.mxu0 0.0
  %1037 = vmatpush1.msra.mxu0 0.0
  %1038 = vmatprep.subr.mxu0 0.0
  %1039 = vmatpush1.msra.mxu0 0.0
  %1040 = vmatprep.subr.mxu0 0.0
  %1041 = vmatpush1.msra.mxu0 0.0
  %1042 = vmatprep.subr.mxu0 0.0
  %1043 = vmatpush1.msra.mxu0 0.0
  %1044 = vmatprep.subr.mxu0 0.0
  %1045 = vmatpush1.msra.mxu0 0.0
  %1046 = vmatprep.subr.mxu0 0.0
  %1047 = vmatpush1.msra.mxu0 0.0
  %1048 = vmatprep.subr.mxu0 0.0
  %1049 = vmatpush1.msra.mxu0 0.0
  %1050 = vmatprep.subr.mxu0 0.0
  %1051 = vmatpush1.msra.mxu0 0.0
  %1052 = vmatprep.mubr.f32.mxu0 0.0
  %v1053 = vand.u32 %v805, 4294901760
  %v1054 = vsub.f32 %v805, %v1053
  %1055 = vmatmul.mubr.f32.gmra.mrb[0].mxu0 %v1054
  %v1056 = vpop.f32.mrb[0].mxu0
  %v1057 = vadd.f32 %v975, %v1056
  %v1058 = vpop.f32.mrb[0].mxu0
  %1059 = vmatprep.mubr.f32.mxu0 0.0
  %v1060 = vand.u32 %v808, 4294901760
  %v1061 = vsub.f32 %v808, %v1060
  %1062 = vmatmul.mubr.f32.gmra.mrb[0].mxu0 %v1061
  %v1063 = vpop.f32.mrb[0].mxu0
  %v1064 = vadd.f32 %v981, %v1063
  %v1065 = vpop.f32.mrb[0].mxu0
  %1066 = vdwg.mxu0
  %1067 = vmatprep.subr.mxu0 0.0
  %v1068 = vand.u32 %v785, 4294901760
  %1069 = vmatpush1.msra.mxu0 %v1068
  %1070 = vmatprep.subr.mxu0 0.0
  %v1071 = vand.u32 %v786, 4294901760
  %1072 = vmatpush1.msra.mxu0 %v1071
  %1073 = vmatprep.subr.mxu0 0.0
  %1074 = vmatpush1.msra.mxu0 0.0
  %1075 = vmatprep.subr.mxu0 0.0
  %1076 = vmatpush1.msra.mxu0 0.0
  %1077 = vmatprep.subr.mxu0 0.0
  %1078 = vmatpush1.msra.mxu0 0.0
  %1079 = vmatprep.subr.mxu0 0.0
  %1080 = vmatpush1.msra.mxu0 0.0
  %1081 = vmatprep.subr.mxu0 0.0
  %1082 = vmatpush1.msra.mxu0 0.0
  %1083 = vmatprep.subr.mxu0 0.0
  %1084 = vmatpush1.msra.mxu0 0.0
  %1085 = vmatprep.subr.mxu0 0.0
  %1086 = vmatpush1.msra.mxu0 0.0
  %1087 = vmatprep.subr.mxu0 0.0
  %1088 = vmatpush1.msra.mxu0 0.0
  %1089 = vmatprep.subr.mxu0 0.0
  %1090 = vmatpush1.msra.mxu0 0.0
  %1091 = vmatprep.subr.mxu0 0.0
  %1092 = vmatpush1.msra.mxu0 0.0
  %1093 = vmatprep.subr.mxu0 0.0
  %1094 = vmatpush1.msra.mxu0 0.0
  %1095 = vmatprep.subr.mxu0 0.0
  %1096 = vmatpush1.msra.mxu0 0.0
  %1097 = vmatprep.subr.mxu0 0.0
  %1098 = vmatpush1.msra.mxu0 0.0
  %1099 = vmatprep.subr.mxu0 0.0
  %1100 = vmatpush1.msra.mxu0 0.0
  %1101 = vmatprep.subr.mxu0 0.0
  %1102 = vmatpush1.msra.mxu0 0.0
  %1103 = vmatprep.subr.mxu0 0.0
  %1104 = vmatpush1.msra.mxu0 0.0
  %1105 = vmatprep.subr.mxu0 0.0
  %1106 = vmatpush1.msra.mxu0 0.0
  %1107 = vmatprep.subr.mxu0 0.0
  %1108 = vmatpush1.msra.mxu0 0.0
  %1109 = vmatprep.subr.mxu0 0.0
  %1110 = vmatpush1.msra.mxu0 0.0
  %1111 = vmatprep.subr.mxu0 0.0
  %1112 = vmatpush1.msra.mxu0 0.0
  %1113 = vmatprep.subr.mxu0 0.0
  %1114 = vmatpush1.msra.mxu0 0.0
  %1115 = vmatprep.subr.mxu0 0.0
  %1116 = vmatpush1.msra.mxu0 0.0
  %1117 = vmatprep.subr.mxu0 0.0
  %1118 = vmatpush1.msra.mxu0 0.0
  %1119 = vmatprep.subr.mxu0 0.0
  %1120 = vmatpush1.msra.mxu0 0.0
  %1121 = vmatprep.subr.mxu0 0.0
  %1122 = vmatpush1.msra.mxu0 0.0
  %1123 = vmatprep.subr.mxu0 0.0
  %1124 = vmatpush1.msra.mxu0 0.0
  %1125 = vmatprep.subr.mxu0 0.0
  %1126 = vmatpush1.msra.mxu0 0.0
  %1127 = vmatprep.subr.mxu0 0.0
  %1128 = vmatpush1.msra.mxu0 0.0
  %1129 = vmatprep.subr.mxu0 0.0
  %1130 = vmatpush1.msra.mxu0 0.0
  %1131 = vmatprep.subr.mxu0 0.0
  %1132 = vmatpush1.msra.mxu0 0.0
  %1133 = vmatprep.mubr.f32.mxu0 0.0
  %v1134 = vand.u32 %v805, 4294901760
  %v1135 = vsub.f32 %v805, %v1134
  %v1136 = vand.u32 %v1135, 4294901760
  %1137 = vmatmul.mubr.f32.gmra.mrb[0].mxu0 %v1136
  %v1138 = vpop.f32.mrb[0].mxu0
  %v1139 = vadd.f32 %v1057, %v1138
  %v1140 = vpop.f32.mrb[0].mxu0
  %1141 = vmatprep.mubr.f32.mxu0 0.0
  %v1142 = vand.u32 %v808, 4294901760
  %v1143 = vsub.f32 %v808, %v1142
  %v1144 = vand.u32 %v1143, 4294901760
  %1145 = vmatmul.mubr.f32.gmra.mrb[0].mxu0 %v1144
  %v1146 = vpop.f32.mrb[0].mxu0
  %v1147 = vadd.f32 %v1064, %v1146
  %v1148 = vpop.f32.mrb[0].mxu0
  %1149 = vdwg.mxu0
  %1150 = vmatprep.subr.mxu0 0.0
  %v1151 = vand.u32 %v785, 4294901760
  %v1152 = vsub.f32 %v785, %v1151
  %v1153 = vand.u32 %v1152, 4294901760
  %1154 = vmatpush1.msra.mxu0 %v1153
  %1155 = vmatprep.subr.mxu0 0.0
  %v1156 = vand.u32 %v786, 4294901760
  %v1157 = vsub.f32 %v786, %v1156
  %v1158 = vand.u32 %v1157, 4294901760
  %1159 = vmatpush1.msra.mxu0 %v1158
  %1160 = vmatprep.subr.mxu0 0.0
  %1161 = vmatpush1.msra.mxu0 0.0
  %1162 = vmatprep.subr.mxu0 0.0
  %1163 = vmatpush1.msra.mxu0 0.0
  %1164 = vmatprep.subr.mxu0 0.0
  %1165 = vmatpush1.msra.mxu0 0.0
  %1166 = vmatprep.subr.mxu0 0.0
  %1167 = vmatpush1.msra.mxu0 0.0
  %1168 = vmatprep.subr.mxu0 0.0
  %1169 = vmatpush1.msra.mxu0 0.0
  %1170 = vmatprep.subr.mxu0 0.0
  %1171 = vmatpush1.msra.mxu0 0.0
  %1172 = vmatprep.subr.mxu0 0.0
  %1173 = vmatpush1.msra.mxu0 0.0
  %1174 = vmatprep.subr.mxu0 0.0
  %1175 = vmatpush1.msra.mxu0 0.0
  %1176 = vmatprep.subr.mxu0 0.0
  %1177 = vmatpush1.msra.mxu0 0.0
  %1178 = vmatprep.subr.mxu0 0.0
  %1179 = vmatpush1.msra.mxu0 0.0
  %1180 = vmatprep.subr.mxu0 0.0
  %1181 = vmatpush1.msra.mxu0 0.0
  %1182 = vmatprep.subr.mxu0 0.0
  %1183 = vmatpush1.msra.mxu0 0.0
  %1184 = vmatprep.subr.mxu0 0.0
  %1185 = vmatpush1.msra.mxu0 0.0
  %1186 = vmatprep.subr.mxu0 0.0
  %1187 = vmatpush1.msra.mxu0 0.0
  %1188 = vmatprep.subr.mxu0 0.0
  %1189 = vmatpush1.msra.mxu0 0.0
  %1190 = vmatprep.subr.mxu0 0.0
  %1191 = vmatpush1.msra.mxu0 0.0
  %1192 = vmatprep.subr.mxu0 0.0
  %1193 = vmatpush1.msra.mxu0 0.0
  %1194 = vmatprep.subr.mxu0 0.0
  %1195 = vmatpush1.msra.mxu0 0.0
  %1196 = vmatprep.subr.mxu0 0.0
  %1197 = vmatpush1.msra.mxu0 0.0
  %1198 = vmatprep.subr.mxu0 0.0
  %1199 = vmatpush1.msra.mxu0 0.0
  %1200 = vmatprep.subr.mxu0 0.0
  %1201 = vmatpush1.msra.mxu0 0.0
  %1202 = vmatprep.subr.mxu0 0.0
  %1203 = vmatpush1.msra.mxu0 0.0
  %1204 = vmatprep.subr.mxu0 0.0
  %1205 = vmatpush1.msra.mxu0 0.0
  %1206 = vmatprep.subr.mxu0 0.0
  %1207 = vmatpush1.msra.mxu0 0.0
  %1208 = vmatprep.subr.mxu0 0.0
  %1209 = vmatpush1.msra.mxu0 0.0
  %1210 = vmatprep.subr.mxu0 0.0
  %1211 = vmatpush1.msra.mxu0 0.0
  %1212 = vmatprep.subr.mxu0 0.0
  %1213 = vmatpush1.msra.mxu0 0.0
  %1214 = vmatprep.subr.mxu0 0.0
  %1215 = vmatpush1.msra.mxu0 0.0
  %1216 = vmatprep.subr.mxu0 0.0
  %1217 = vmatpush1.msra.mxu0 0.0
  %1218 = vmatprep.subr.mxu0 0.0
  %1219 = vmatpush1.msra.mxu0 0.0
  %1220 = vmatprep.mubr.f32.mxu0 0.0
  %v1221 = vand.u32 %v805, 4294901760
  %1222 = vmatmul.mubr.f32.gmra.mrb[0].mxu0 %v1221
  %v1223 = vpop.f32.mrb[0].mxu0
  %v1224 = vadd.f32 %v1139, %v1223
  %v1225 = vpop.f32.mrb[0].mxu0
  %1226 = vmatprep.mubr.f32.mxu0 0.0
  %v1227 = vand.u32 %v808, 4294901760
  %1228 = vmatmul.mubr.f32.gmra.mrb[0].mxu0 %v1227
  %v1229 = vpop.f32.mrb[0].mxu0
  %v1230 = vadd.f32 %v1147, %v1229
  %v1231 = vpop.f32.mrb[0].mxu0
  %1232 = vdwg.mxu0
  %1233 = vmatprep.subr.mxu0 0.0
  %v1234 = vand.u32 %v785, 4294901760
  %1235 = vmatpush1.msra.mxu0 %v1234
  %1236 = vmatprep.subr.mxu0 0.0
  %v1237 = vand.u32 %v786, 4294901760
  %1238 = vmatpush1.msra.mxu0 %v1237
  %1239 = vmatprep.subr.mxu0 0.0
  %1240 = vmatpush1.msra.mxu0 0.0
  %1241 = vmatprep.subr.mxu0 0.0
  %1242 = vmatpush1.msra.mxu0 0.0
  %1243 = vmatprep.subr.mxu0 0.0
  %1244 = vmatpush1.msra.mxu0 0.0
  %1245 = vmatprep.subr.mxu0 0.0
  %1246 = vmatpush1.msra.mxu0 0.0
  %1247 = vmatprep.subr.mxu0 0.0
  %1248 = vmatpush1.msra.mxu0 0.0
  %1249 = vmatprep.subr.mxu0 0.0
  %1250 = vmatpush1.msra.mxu0 0.0
  %1251 = vmatprep.subr.mxu0 0.0
  %1252 = vmatpush1.msra.mxu0 0.0
  %1253 = vmatprep.subr.mxu0 0.0
  %1254 = vmatpush1.msra.mxu0 0.0
  %1255 = vmatprep.subr.mxu0 0.0
  %1256 = vmatpush1.msra.mxu0 0.0
  %1257 = vmatprep.subr.mxu0 0.0
  %1258 = vmatpush1.msra.mxu0 0.0
  %1259 = vmatprep.subr.mxu0 0.0
  %1260 = vmatpush1.msra.mxu0 0.0
  %1261 = vmatprep.subr.mxu0 0.0
  %1262 = vmatpush1.msra.mxu0 0.0
  %1263 = vmatprep.subr.mxu0 0.0
  %1264 = vmatpush1.msra.mxu0 0.0
  %1265 = vmatprep.subr.mxu0 0.0
  %1266 = vmatpush1.msra.mxu0 0.0
  %1267 = vmatprep.subr.mxu0 0.0
  %1268 = vmatpush1.msra.mxu0 0.0
  %1269 = vmatprep.subr.mxu0 0.0
  %1270 = vmatpush1.msra.mxu0 0.0
  %1271 = vmatprep.subr.mxu0 0.0
  %1272 = vmatpush1.msra.mxu0 0.0
  %1273 = vmatprep.subr.mxu0 0.0
  %1274 = vmatpush1.msra.mxu0 0.0
  %1275 = vmatprep.subr.mxu0 0.0
  %1276 = vmatpush1.msra.mxu0 0.0
  %1277 = vmatprep.subr.mxu0 0.0
  %1278 = vmatpush1.msra.mxu0 0.0
  %1279 = vmatprep.subr.mxu0 0.0
  %1280 = vmatpush1.msra.mxu0 0.0
  %1281 = vmatprep.subr.mxu0 0.0
  %1282 = vmatpush1.msra.mxu0 0.0
  %1283 = vmatprep.subr.mxu0 0.0
  %1284 = vmatpush1.msra.mxu0 0.0
  %1285 = vmatprep.subr.mxu0 0.0
  %1286 = vmatpush1.msra.mxu0 0.0
  %1287 = vmatprep.subr.mxu0 0.0
  %1288 = vmatpush1.msra.mxu0 0.0
  %1289 = vmatprep.subr.mxu0 0.0
  %1290 = vmatpush1.msra.mxu0 0.0
  %1291 = vmatprep.subr.mxu0 0.0
  %1292 = vmatpush1.msra.mxu0 0.0
  %1293 = vmatprep.subr.mxu0 0.0
  %1294 = vmatpush1.msra.mxu0 0.0
  %1295 = vmatprep.subr.mxu0 0.0
  %1296 = vmatpush1.msra.mxu0 0.0
  %1297 = vmatprep.subr.mxu0 0.0
  %1298 = vmatpush1.msra.mxu0 0.0
  %1299 = vmatprep.mubr.f32.mxu0 0.0
  %v1300 = vand.u32 %v805, 4294901760
  %1301 = vmatmul.mubr.f32.gmra.mrb[0].mxu0 %v1300
  %v1302 = vpop.f32.mrb[0].mxu0
  %v1303 = vadd.f32 %v1224, %v1302
  %v1304 = vpop.f32.mrb[0].mxu0
  %1305 = vmatprep.mubr.f32.mxu0 0.0
  %v1306 = vand.u32 %v808, 4294901760
  %1307 = vmatmul.mubr.f32.gmra.mrb[0].mxu0 %v1306
  %v1308 = vpop.f32.mrb[0].mxu0
  %v1309 = vadd.f32 %v1230, %v1308
  %v1310 = vpop.f32.mrb[0].mxu0
  %1311 = vdwg.mxu0
  %v1312 = vmul.f32 %v1303, 0.01
  %v1313 = vmul.f32 %v1309, 0.01
  %v1314 = vmax.f32 %v1303, %v1312
  %v1315 = vmax.f32 %v1309, %v1313
  %s1316 = scalar_lea.vmem %s1, 32
  %v1317 = vld [vmem:[%s1316] sm:$0xff]
  %v1318 = vld [vmem:[%s1316 + $0x8] sm:$0xff]
  %s1319 = scalar_lea.vmem %s2, 32
  %v1320 = vld [vmem:[%s1319] sm:$0xff]
  %v1321 = vld [vmem:[%s1319 + $0x8] sm:$0xff]
  %1323 = vset.pattern.permute.xlu0 0
  %1324 = vperm.xlu0 %1323, %v1320
  %v1325 = vpop.permute.xlu0 %1324
  %1328 = vset.pattern.permute.xlu0 0
  %1329 = vperm.xlu0 %1328, %v1321
  %v1330 = vpop.permute.xlu0 %1329
  %v1333 = vsel %vm803, %v1317, 0
  %v1336 = vsel %vm803, %v1318, 0
  %1338 = vmatprep.subr.mxu0 0.0
  %v1339 = vand.u32 %v1314, 4294901760
  %1340 = vmatpush1.msra.mxu0 %v1339
  %1341 = vmatprep.subr.mxu0 0.0
  %v1342 = vand.u32 %v1315, 4294901760
  %1343 = vmatpush1.msra.mxu0 %v1342
  %1344 = vmatprep.subr.mxu0 0.0
  %1345 = vmatpush1.msra.mxu0 0.0
  %1346 = vmatprep.subr.mxu0 0.0
  %1347 = vmatpush1.msra.mxu0 0.0
  %1348 = vmatprep.subr.mxu0 0.0
  %1349 = vmatpush1.msra.mxu0 0.0
  %1350 = vmatprep.subr.mxu0 0.0
  %1351 = vmatpush1.msra.mxu0 0.0
  %1352 = vmatprep.subr.mxu0 0.0
  %1353 = vmatpush1.msra.mxu0 0.0
  %1354 = vmatprep.subr.mxu0 0.0
  %1355 = vmatpush1.msra.mxu0 0.0
  %1356 = vmatprep.subr.mxu0 0.0
  %1357 = vmatpush1.msra.mxu0 0.0
  %1358 = vmatprep.subr.mxu0 0.0
  %1359 = vmatpush1.msra.mxu0 0.0
  %1360 = vmatprep.subr.mxu0 0.0
  %1361 = vmatpush1.msra.mxu0 0.0
  %1362 = vmatprep.subr.mxu0 0.0
  %1363 = vmatpush1.msra.mxu0 0.0
  %1364 = vmatprep.subr.mxu0 0.0
  %1365 = vmatpush1.msra.mxu0 0.0
  %1366 = vmatprep.subr.mxu0 0.0
  %1367 = vmatpush1.msra.mxu0 0.0
  %1368 = vmatprep.subr.mxu0 0.0
  %1369 = vmatpush1.msra.mxu0 0.0
  %1370 = vmatprep.subr.mxu0 0.0
  %1371 = vmatpush1.msra.mxu0 0.0
  %1372 = vmatprep.subr.mxu0 0.0
  %1373 = vmatpush1.msra.mxu0 0.0
  %1374 = vmatprep.subr.mxu0 0.0
  %1375 = vmatpush1.msra.mxu0 0.0
  %1376 = vmatprep.subr.mxu0 0.0
  %1377 = vmatpush1.msra.mxu0 0.0
  %1378 = vmatprep.subr.mxu0 0.0
  %1379 = vmatpush1.msra.mxu0 0.0
  %1380 = vmatprep.subr.mxu0 0.0
  %1381 = vmatpush1.msra.mxu0 0.0
  %1382 = vmatprep.subr.mxu0 0.0
  %1383 = vmatpush1.msra.mxu0 0.0
  %1384 = vmatprep.subr.mxu0 0.0
  %1385 = vmatpush1.msra.mxu0 0.0
  %1386 = vmatprep.subr.mxu0 0.0
  %1387 = vmatpush1.msra.mxu0 0.0
  %1388 = vmatprep.subr.mxu0 0.0
  %1389 = vmatpush1.msra.mxu0 0.0
  %1390 = vmatprep.subr.mxu0 0.0
  %1391 = vmatpush1.msra.mxu0 0.0
  %1392 = vmatprep.subr.mxu0 0.0
  %1393 = vmatpush1.msra.mxu0 0.0
  %1394 = vmatprep.subr.mxu0 0.0
  %1395 = vmatpush1.msra.mxu0 0.0
  %1396 = vmatprep.subr.mxu0 0.0
  %1397 = vmatpush1.msra.mxu0 0.0
  %1398 = vmatprep.subr.mxu0 0.0
  %1399 = vmatpush1.msra.mxu0 0.0
  %1400 = vmatprep.subr.mxu0 0.0
  %1401 = vmatpush1.msra.mxu0 0.0
  %1402 = vmatprep.subr.mxu0 0.0
  %1403 = vmatpush1.msra.mxu0 0.0
  %1404 = vmatprep.mubr.f32.mxu0 0.0
  %v1405 = vand.u32 %v1333, 4294901760
  %v1406 = vsub.f32 %v1333, %v1405
  %v1407 = vand.u32 %v1406, 4294901760
  %v1408 = vsub.f32 %v1406, %v1407
  %v1409 = vand.u32 %v1408, 4294901760
  %1410 = vmatmul.mubr.f32.gmra.mrb[0].mxu0 %v1409
  %v1411 = vpop.f32.mrb[0].mxu0
  %v1412 = vadd.f32 %v1325, %v1411
  %v1413 = vpop.f32.mrb[0].mxu0
  %1414 = vmatprep.mubr.f32.mxu0 0.0
  %v1415 = vand.u32 %v1336, 4294901760
  %v1416 = vsub.f32 %v1336, %v1415
  %v1417 = vand.u32 %v1416, 4294901760
  %v1418 = vsub.f32 %v1416, %v1417
  %v1419 = vand.u32 %v1418, 4294901760
  %1420 = vmatmul.mubr.f32.gmra.mrb[0].mxu0 %v1419
  %v1421 = vpop.f32.mrb[0].mxu0
  %v1422 = vadd.f32 %v1330, %v1421
  %v1423 = vpop.f32.mrb[0].mxu0
  %1424 = vdwg.mxu0
  %1425 = vmatprep.subr.mxu0 0.0
  %v1426 = vand.u32 %v1314, 4294901760
  %v1427 = vsub.f32 %v1314, %v1426
  %v1428 = vand.u32 %v1427, 4294901760
  %v1429 = vsub.f32 %v1427, %v1428
  %v1430 = vand.u32 %v1429, 4294901760
  %1431 = vmatpush1.msra.mxu0 %v1430
  %1432 = vmatprep.subr.mxu0 0.0
  %v1433 = vand.u32 %v1315, 4294901760
  %v1434 = vsub.f32 %v1315, %v1433
  %v1435 = vand.u32 %v1434, 4294901760
  %v1436 = vsub.f32 %v1434, %v1435
  %v1437 = vand.u32 %v1436, 4294901760
  %1438 = vmatpush1.msra.mxu0 %v1437
  %1439 = vmatprep.subr.mxu0 0.0
  %1440 = vmatpush1.msra.mxu0 0.0
  %1441 = vmatprep.subr.mxu0 0.0
  %1442 = vmatpush1.msra.mxu0 0.0
  %1443 = vmatprep.subr.mxu0 0.0
  %1444 = vmatpush1.msra.mxu0 0.0
  %1445 = vmatprep.subr.mxu0 0.0
  %1446 = vmatpush1.msra.mxu0 0.0
  %1447 = vmatprep.subr.mxu0 0.0
  %1448 = vmatpush1.msra.mxu0 0.0
  %1449 = vmatprep.subr.mxu0 0.0
  %1450 = vmatpush1.msra.mxu0 0.0
  %1451 = vmatprep.subr.mxu0 0.0
  %1452 = vmatpush1.msra.mxu0 0.0
  %1453 = vmatprep.subr.mxu0 0.0
  %1454 = vmatpush1.msra.mxu0 0.0
  %1455 = vmatprep.subr.mxu0 0.0
  %1456 = vmatpush1.msra.mxu0 0.0
  %1457 = vmatprep.subr.mxu0 0.0
  %1458 = vmatpush1.msra.mxu0 0.0
  %1459 = vmatprep.subr.mxu0 0.0
  %1460 = vmatpush1.msra.mxu0 0.0
  %1461 = vmatprep.subr.mxu0 0.0
  %1462 = vmatpush1.msra.mxu0 0.0
  %1463 = vmatprep.subr.mxu0 0.0
  %1464 = vmatpush1.msra.mxu0 0.0
  %1465 = vmatprep.subr.mxu0 0.0
  %1466 = vmatpush1.msra.mxu0 0.0
  %1467 = vmatprep.subr.mxu0 0.0
  %1468 = vmatpush1.msra.mxu0 0.0
  %1469 = vmatprep.subr.mxu0 0.0
  %1470 = vmatpush1.msra.mxu0 0.0
  %1471 = vmatprep.subr.mxu0 0.0
  %1472 = vmatpush1.msra.mxu0 0.0
  %1473 = vmatprep.subr.mxu0 0.0
  %1474 = vmatpush1.msra.mxu0 0.0
  %1475 = vmatprep.subr.mxu0 0.0
  %1476 = vmatpush1.msra.mxu0 0.0
  %1477 = vmatprep.subr.mxu0 0.0
  %1478 = vmatpush1.msra.mxu0 0.0
  %1479 = vmatprep.subr.mxu0 0.0
  %1480 = vmatpush1.msra.mxu0 0.0
  %1481 = vmatprep.subr.mxu0 0.0
  %1482 = vmatpush1.msra.mxu0 0.0
  %1483 = vmatprep.subr.mxu0 0.0
  %1484 = vmatpush1.msra.mxu0 0.0
  %1485 = vmatprep.subr.mxu0 0.0
  %1486 = vmatpush1.msra.mxu0 0.0
  %1487 = vmatprep.subr.mxu0 0.0
  %1488 = vmatpush1.msra.mxu0 0.0
  %1489 = vmatprep.subr.mxu0 0.0
  %1490 = vmatpush1.msra.mxu0 0.0
  %1491 = vmatprep.subr.mxu0 0.0
  %1492 = vmatpush1.msra.mxu0 0.0
  %1493 = vmatprep.subr.mxu0 0.0
  %1494 = vmatpush1.msra.mxu0 0.0
  %1495 = vmatprep.subr.mxu0 0.0
  %1496 = vmatpush1.msra.mxu0 0.0
  %1497 = vmatprep.subr.mxu0 0.0
  %1498 = vmatpush1.msra.mxu0 0.0
  %1499 = vmatprep.mubr.f32.mxu0 0.0
  %v1500 = vand.u32 %v1333, 4294901760
  %1501 = vmatmul.mubr.f32.gmra.mrb[0].mxu0 %v1500
  %v1502 = vpop.f32.mrb[0].mxu0
  %v1503 = vadd.f32 %v1412, %v1502
  %v1504 = vpop.f32.mrb[0].mxu0
  %1505 = vmatprep.mubr.f32.mxu0 0.0
  %v1506 = vand.u32 %v1336, 4294901760
  %1507 = vmatmul.mubr.f32.gmra.mrb[0].mxu0 %v1506
  %v1508 = vpop.f32.mrb[0].mxu0
  %v1509 = vadd.f32 %v1422, %v1508
  %v1510 = vpop.f32.mrb[0].mxu0
  %1511 = vdwg.mxu0
  %1512 = vmatprep.subr.mxu0 0.0
  %v1513 = vand.u32 %v1314, 4294901760
  %v1514 = vsub.f32 %v1314, %v1513
  %1515 = vmatpush1.msra.mxu0 %v1514
  %1516 = vmatprep.subr.mxu0 0.0
  %v1517 = vand.u32 %v1315, 4294901760
  %v1518 = vsub.f32 %v1315, %v1517
  %1519 = vmatpush1.msra.mxu0 %v1518
  %1520 = vmatprep.subr.mxu0 0.0
  %1521 = vmatpush1.msra.mxu0 0.0
  %1522 = vmatprep.subr.mxu0 0.0
  %1523 = vmatpush1.msra.mxu0 0.0
  %1524 = vmatprep.subr.mxu0 0.0
  %1525 = vmatpush1.msra.mxu0 0.0
  %1526 = vmatprep.subr.mxu0 0.0
  %1527 = vmatpush1.msra.mxu0 0.0
  %1528 = vmatprep.subr.mxu0 0.0
  %1529 = vmatpush1.msra.mxu0 0.0
  %1530 = vmatprep.subr.mxu0 0.0
  %1531 = vmatpush1.msra.mxu0 0.0
  %1532 = vmatprep.subr.mxu0 0.0
  %1533 = vmatpush1.msra.mxu0 0.0
  %1534 = vmatprep.subr.mxu0 0.0
  %1535 = vmatpush1.msra.mxu0 0.0
  %1536 = vmatprep.subr.mxu0 0.0
  %1537 = vmatpush1.msra.mxu0 0.0
  %1538 = vmatprep.subr.mxu0 0.0
  %1539 = vmatpush1.msra.mxu0 0.0
  %1540 = vmatprep.subr.mxu0 0.0
  %1541 = vmatpush1.msra.mxu0 0.0
  %1542 = vmatprep.subr.mxu0 0.0
  %1543 = vmatpush1.msra.mxu0 0.0
  %1544 = vmatprep.subr.mxu0 0.0
  %1545 = vmatpush1.msra.mxu0 0.0
  %1546 = vmatprep.subr.mxu0 0.0
  %1547 = vmatpush1.msra.mxu0 0.0
  %1548 = vmatprep.subr.mxu0 0.0
  %1549 = vmatpush1.msra.mxu0 0.0
  %1550 = vmatprep.subr.mxu0 0.0
  %1551 = vmatpush1.msra.mxu0 0.0
  %1552 = vmatprep.subr.mxu0 0.0
  %1553 = vmatpush1.msra.mxu0 0.0
  %1554 = vmatprep.subr.mxu0 0.0
  %1555 = vmatpush1.msra.mxu0 0.0
  %1556 = vmatprep.subr.mxu0 0.0
  %1557 = vmatpush1.msra.mxu0 0.0
  %1558 = vmatprep.subr.mxu0 0.0
  %1559 = vmatpush1.msra.mxu0 0.0
  %1560 = vmatprep.subr.mxu0 0.0
  %1561 = vmatpush1.msra.mxu0 0.0
  %1562 = vmatprep.subr.mxu0 0.0
  %1563 = vmatpush1.msra.mxu0 0.0
  %1564 = vmatprep.subr.mxu0 0.0
  %1565 = vmatpush1.msra.mxu0 0.0
  %1566 = vmatprep.subr.mxu0 0.0
  %1567 = vmatpush1.msra.mxu0 0.0
  %1568 = vmatprep.subr.mxu0 0.0
  %1569 = vmatpush1.msra.mxu0 0.0
  %1570 = vmatprep.subr.mxu0 0.0
  %1571 = vmatpush1.msra.mxu0 0.0
  %1572 = vmatprep.subr.mxu0 0.0
  %1573 = vmatpush1.msra.mxu0 0.0
  %1574 = vmatprep.subr.mxu0 0.0
  %1575 = vmatpush1.msra.mxu0 0.0
  %1576 = vmatprep.subr.mxu0 0.0
  %1577 = vmatpush1.msra.mxu0 0.0
  %1578 = vmatprep.subr.mxu0 0.0
  %1579 = vmatpush1.msra.mxu0 0.0
  %1580 = vmatprep.mubr.f32.mxu0 0.0
  %v1581 = vand.u32 %v1333, 4294901760
  %v1582 = vsub.f32 %v1333, %v1581
  %1583 = vmatmul.mubr.f32.gmra.mrb[0].mxu0 %v1582
  %v1584 = vpop.f32.mrb[0].mxu0
  %v1585 = vadd.f32 %v1503, %v1584
  %v1586 = vpop.f32.mrb[0].mxu0
  %1587 = vmatprep.mubr.f32.mxu0 0.0
  %v1588 = vand.u32 %v1336, 4294901760
  %v1589 = vsub.f32 %v1336, %v1588
  %1590 = vmatmul.mubr.f32.gmra.mrb[0].mxu0 %v1589
  %v1591 = vpop.f32.mrb[0].mxu0
  %v1592 = vadd.f32 %v1509, %v1591
  %v1593 = vpop.f32.mrb[0].mxu0
  %1594 = vdwg.mxu0
  %1595 = vmatprep.subr.mxu0 0.0
  %v1596 = vand.u32 %v1314, 4294901760
  %1597 = vmatpush1.msra.mxu0 %v1596
  %1598 = vmatprep.subr.mxu0 0.0
  %v1599 = vand.u32 %v1315, 4294901760
  %1600 = vmatpush1.msra.mxu0 %v1599
  %1601 = vmatprep.subr.mxu0 0.0
  %1602 = vmatpush1.msra.mxu0 0.0
  %1603 = vmatprep.subr.mxu0 0.0
  %1604 = vmatpush1.msra.mxu0 0.0
  %1605 = vmatprep.subr.mxu0 0.0
  %1606 = vmatpush1.msra.mxu0 0.0
  %1607 = vmatprep.subr.mxu0 0.0
  %1608 = vmatpush1.msra.mxu0 0.0
  %1609 = vmatprep.subr.mxu0 0.0
  %1610 = vmatpush1.msra.mxu0 0.0
  %1611 = vmatprep.subr.mxu0 0.0
  %1612 = vmatpush1.msra.mxu0 0.0
  %1613 = vmatprep.subr.mxu0 0.0
  %1614 = vmatpush1.msra.mxu0 0.0
  %1615 = vmatprep.subr.mxu0 0.0
  %1616 = vmatpush1.msra.mxu0 0.0
  %1617 = vmatprep.subr.mxu0 0.0
  %1618 = vmatpush1.msra.mxu0 0.0
  %1619 = vmatprep.subr.mxu0 0.0
  %1620 = vmatpush1.msra.mxu0 0.0
  %1621 = vmatprep.subr.mxu0 0.0
  %1622 = vmatpush1.msra.mxu0 0.0
  %1623 = vmatprep.subr.mxu0 0.0
  %1624 = vmatpush1.msra.mxu0 0.0
  %1625 = vmatprep.subr.mxu0 0.0
  %1626 = vmatpush1.msra.mxu0 0.0
  %1627 = vmatprep.subr.mxu0 0.0
  %1628 = vmatpush1.msra.mxu0 0.0
  %1629 = vmatprep.subr.mxu0 0.0
  %1630 = vmatpush1.msra.mxu0 0.0
  %1631 = vmatprep.subr.mxu0 0.0
  %1632 = vmatpush1.msra.mxu0 0.0
  %1633 = vmatprep.subr.mxu0 0.0
  %1634 = vmatpush1.msra.mxu0 0.0
  %1635 = vmatprep.subr.mxu0 0.0
  %1636 = vmatpush1.msra.mxu0 0.0
  %1637 = vmatprep.subr.mxu0 0.0
  %1638 = vmatpush1.msra.mxu0 0.0
  %1639 = vmatprep.subr.mxu0 0.0
  %1640 = vmatpush1.msra.mxu0 0.0
  %1641 = vmatprep.subr.mxu0 0.0
  %1642 = vmatpush1.msra.mxu0 0.0
  %1643 = vmatprep.subr.mxu0 0.0
  %1644 = vmatpush1.msra.mxu0 0.0
  %1645 = vmatprep.subr.mxu0 0.0
  %1646 = vmatpush1.msra.mxu0 0.0
  %1647 = vmatprep.subr.mxu0 0.0
  %1648 = vmatpush1.msra.mxu0 0.0
  %1649 = vmatprep.subr.mxu0 0.0
  %1650 = vmatpush1.msra.mxu0 0.0
  %1651 = vmatprep.subr.mxu0 0.0
  %1652 = vmatpush1.msra.mxu0 0.0
  %1653 = vmatprep.subr.mxu0 0.0
  %1654 = vmatpush1.msra.mxu0 0.0
  %1655 = vmatprep.subr.mxu0 0.0
  %1656 = vmatpush1.msra.mxu0 0.0
  %1657 = vmatprep.subr.mxu0 0.0
  %1658 = vmatpush1.msra.mxu0 0.0
  %1659 = vmatprep.subr.mxu0 0.0
  %1660 = vmatpush1.msra.mxu0 0.0
  %1661 = vmatprep.mubr.f32.mxu0 0.0
  %v1662 = vand.u32 %v1333, 4294901760
  %v1663 = vsub.f32 %v1333, %v1662
  %v1664 = vand.u32 %v1663, 4294901760
  %1665 = vmatmul.mubr.f32.gmra.mrb[0].mxu0 %v1664
  %v1666 = vpop.f32.mrb[0].mxu0
  %v1667 = vadd.f32 %v1585, %v1666
  %v1668 = vpop.f32.mrb[0].mxu0
  %1669 = vmatprep.mubr.f32.mxu0 0.0
  %v1670 = vand.u32 %v1336, 4294901760
  %v1671 = vsub.f32 %v1336, %v1670
  %v1672 = vand.u32 %v1671, 4294901760
  %1673 = vmatmul.mubr.f32.gmra.mrb[0].mxu0 %v1672
  %v1674 = vpop.f32.mrb[0].mxu0
  %v1675 = vadd.f32 %v1592, %v1674
  %v1676 = vpop.f32.mrb[0].mxu0
  %1677 = vdwg.mxu0
  %1678 = vmatprep.subr.mxu0 0.0
  %v1679 = vand.u32 %v1314, 4294901760
  %v1680 = vsub.f32 %v1314, %v1679
  %v1681 = vand.u32 %v1680, 4294901760
  %1682 = vmatpush1.msra.mxu0 %v1681
  %1683 = vmatprep.subr.mxu0 0.0
  %v1684 = vand.u32 %v1315, 4294901760
  %v1685 = vsub.f32 %v1315, %v1684
  %v1686 = vand.u32 %v1685, 4294901760
  %1687 = vmatpush1.msra.mxu0 %v1686
  %1688 = vmatprep.subr.mxu0 0.0
  %1689 = vmatpush1.msra.mxu0 0.0
  %1690 = vmatprep.subr.mxu0 0.0
  %1691 = vmatpush1.msra.mxu0 0.0
  %1692 = vmatprep.subr.mxu0 0.0
  %1693 = vmatpush1.msra.mxu0 0.0
  %1694 = vmatprep.subr.mxu0 0.0
  %1695 = vmatpush1.msra.mxu0 0.0
  %1696 = vmatprep.subr.mxu0 0.0
  %1697 = vmatpush1.msra.mxu0 0.0
  %1698 = vmatprep.subr.mxu0 0.0
  %1699 = vmatpush1.msra.mxu0 0.0
  %1700 = vmatprep.subr.mxu0 0.0
  %1701 = vmatpush1.msra.mxu0 0.0
  %1702 = vmatprep.subr.mxu0 0.0
  %1703 = vmatpush1.msra.mxu0 0.0
  %1704 = vmatprep.subr.mxu0 0.0
  %1705 = vmatpush1.msra.mxu0 0.0
  %1706 = vmatprep.subr.mxu0 0.0
  %1707 = vmatpush1.msra.mxu0 0.0
  %1708 = vmatprep.subr.mxu0 0.0
  %1709 = vmatpush1.msra.mxu0 0.0
  %1710 = vmatprep.subr.mxu0 0.0
  %1711 = vmatpush1.msra.mxu0 0.0
  %1712 = vmatprep.subr.mxu0 0.0
  %1713 = vmatpush1.msra.mxu0 0.0
  %1714 = vmatprep.subr.mxu0 0.0
  %1715 = vmatpush1.msra.mxu0 0.0
  %1716 = vmatprep.subr.mxu0 0.0
  %1717 = vmatpush1.msra.mxu0 0.0
  %1718 = vmatprep.subr.mxu0 0.0
  %1719 = vmatpush1.msra.mxu0 0.0
  %1720 = vmatprep.subr.mxu0 0.0
  %1721 = vmatpush1.msra.mxu0 0.0
  %1722 = vmatprep.subr.mxu0 0.0
  %1723 = vmatpush1.msra.mxu0 0.0
  %1724 = vmatprep.subr.mxu0 0.0
  %1725 = vmatpush1.msra.mxu0 0.0
  %1726 = vmatprep.subr.mxu0 0.0
  %1727 = vmatpush1.msra.mxu0 0.0
  %1728 = vmatprep.subr.mxu0 0.0
  %1729 = vmatpush1.msra.mxu0 0.0
  %1730 = vmatprep.subr.mxu0 0.0
  %1731 = vmatpush1.msra.mxu0 0.0
  %1732 = vmatprep.subr.mxu0 0.0
  %1733 = vmatpush1.msra.mxu0 0.0
  %1734 = vmatprep.subr.mxu0 0.0
  %1735 = vmatpush1.msra.mxu0 0.0
  %1736 = vmatprep.subr.mxu0 0.0
  %1737 = vmatpush1.msra.mxu0 0.0
  %1738 = vmatprep.subr.mxu0 0.0
  %1739 = vmatpush1.msra.mxu0 0.0
  %1740 = vmatprep.subr.mxu0 0.0
  %1741 = vmatpush1.msra.mxu0 0.0
  %1742 = vmatprep.subr.mxu0 0.0
  %1743 = vmatpush1.msra.mxu0 0.0
  %1744 = vmatprep.subr.mxu0 0.0
  %1745 = vmatpush1.msra.mxu0 0.0
  %1746 = vmatprep.subr.mxu0 0.0
  %1747 = vmatpush1.msra.mxu0 0.0
  %1748 = vmatprep.mubr.f32.mxu0 0.0
  %v1749 = vand.u32 %v1333, 4294901760
  %1750 = vmatmul.mubr.f32.gmra.mrb[0].mxu0 %v1749
  %v1751 = vpop.f32.mrb[0].mxu0
  %v1752 = vadd.f32 %v1667, %v1751
  %v1753 = vpop.f32.mrb[0].mxu0
  %1754 = vmatprep.mubr.f32.mxu0 0.0
  %v1755 = vand.u32 %v1336, 4294901760
  %1756 = vmatmul.mubr.f32.gmra.mrb[0].mxu0 %v1755
  %v1757 = vpop.f32.mrb[0].mxu0
  %v1758 = vadd.f32 %v1675, %v1757
  %v1759 = vpop.f32.mrb[0].mxu0
  %1760 = vdwg.mxu0
  %1761 = vmatprep.subr.mxu0 0.0
  %v1762 = vand.u32 %v1314, 4294901760
  %1763 = vmatpush1.msra.mxu0 %v1762
  %1764 = vmatprep.subr.mxu0 0.0
  %v1765 = vand.u32 %v1315, 4294901760
  %1766 = vmatpush1.msra.mxu0 %v1765
  %1767 = vmatprep.subr.mxu0 0.0
  %1768 = vmatpush1.msra.mxu0 0.0
  %1769 = vmatprep.subr.mxu0 0.0
  %1770 = vmatpush1.msra.mxu0 0.0
  %1771 = vmatprep.subr.mxu0 0.0
  %1772 = vmatpush1.msra.mxu0 0.0
  %1773 = vmatprep.subr.mxu0 0.0
  %1774 = vmatpush1.msra.mxu0 0.0
  %1775 = vmatprep.subr.mxu0 0.0
  %1776 = vmatpush1.msra.mxu0 0.0
  %1777 = vmatprep.subr.mxu0 0.0
  %1778 = vmatpush1.msra.mxu0 0.0
  %1779 = vmatprep.subr.mxu0 0.0
  %1780 = vmatpush1.msra.mxu0 0.0
  %1781 = vmatprep.subr.mxu0 0.0
  %1782 = vmatpush1.msra.mxu0 0.0
  %1783 = vmatprep.subr.mxu0 0.0
  %1784 = vmatpush1.msra.mxu0 0.0
  %1785 = vmatprep.subr.mxu0 0.0
  %1786 = vmatpush1.msra.mxu0 0.0
  %1787 = vmatprep.subr.mxu0 0.0
  %1788 = vmatpush1.msra.mxu0 0.0
  %1789 = vmatprep.subr.mxu0 0.0
  %1790 = vmatpush1.msra.mxu0 0.0
  %1791 = vmatprep.subr.mxu0 0.0
  %1792 = vmatpush1.msra.mxu0 0.0
  %1793 = vmatprep.subr.mxu0 0.0
  %1794 = vmatpush1.msra.mxu0 0.0
  %1795 = vmatprep.subr.mxu0 0.0
  %1796 = vmatpush1.msra.mxu0 0.0
  %1797 = vmatprep.subr.mxu0 0.0
  %1798 = vmatpush1.msra.mxu0 0.0
  %1799 = vmatprep.subr.mxu0 0.0
  %1800 = vmatpush1.msra.mxu0 0.0
  %1801 = vmatprep.subr.mxu0 0.0
  %1802 = vmatpush1.msra.mxu0 0.0
  %1803 = vmatprep.subr.mxu0 0.0
  %1804 = vmatpush1.msra.mxu0 0.0
  %1805 = vmatprep.subr.mxu0 0.0
  %1806 = vmatpush1.msra.mxu0 0.0
  %1807 = vmatprep.subr.mxu0 0.0
  %1808 = vmatpush1.msra.mxu0 0.0
  %1809 = vmatprep.subr.mxu0 0.0
  %1810 = vmatpush1.msra.mxu0 0.0
  %1811 = vmatprep.subr.mxu0 0.0
  %1812 = vmatpush1.msra.mxu0 0.0
  %1813 = vmatprep.subr.mxu0 0.0
  %1814 = vmatpush1.msra.mxu0 0.0
  %1815 = vmatprep.subr.mxu0 0.0
  %1816 = vmatpush1.msra.mxu0 0.0
  %1817 = vmatprep.subr.mxu0 0.0
  %1818 = vmatpush1.msra.mxu0 0.0
  %1819 = vmatprep.subr.mxu0 0.0
  %1820 = vmatpush1.msra.mxu0 0.0
  %1821 = vmatprep.subr.mxu0 0.0
  %1822 = vmatpush1.msra.mxu0 0.0
  %1823 = vmatprep.subr.mxu0 0.0
  %1824 = vmatpush1.msra.mxu0 0.0
  %1825 = vmatprep.subr.mxu0 0.0
  %1826 = vmatpush1.msra.mxu0 0.0
  %1827 = vmatprep.mubr.f32.mxu0 0.0
  %v1828 = vand.u32 %v1333, 4294901760
  %1829 = vmatmul.mubr.f32.gmra.mrb[0].mxu0 %v1828
  %v1830 = vpop.f32.mrb[0].mxu0
  %v1831 = vadd.f32 %v1752, %v1830
  %v1832 = vpop.f32.mrb[0].mxu0
  %1833 = vmatprep.mubr.f32.mxu0 0.0
  %v1834 = vand.u32 %v1336, 4294901760
  %1835 = vmatmul.mubr.f32.gmra.mrb[0].mxu0 %v1834
  %v1836 = vpop.f32.mrb[0].mxu0
  %v1837 = vadd.f32 %v1758, %v1836
  %v1838 = vpop.f32.mrb[0].mxu0
  %1839 = vdwg.mxu0
  %v1840 = vmul.f32 %v1831, 0.01
  %v1841 = vmul.f32 %v1837, 0.01
  %v1842 = vmax.f32 %v1831, %v1840
  %v1843 = vmax.f32 %v1837, %v1841
  %s1844 = scalar_lea.vmem %s1, 48
  %v1845 = vld [vmem:[%s1844] sm:$0xff]
  %s1846 = scalar_lea.vmem %s2, 48
  %v1847 = vld [vmem:[%s1846] sm:$0xff]
  %1849 = vset.pattern.permute.xlu0 0
  %1850 = vperm.xlu0 %1849, %v1847
  %v1851 = vpop.permute.xlu0 %1850
  %v1854 = vsel %vm803, %v1845, 0
  %1856 = vmatprep.subr.mxu0 0.0
  %v1857 = vand.u32 %v1842, 4294901760
  %1858 = vmatpush1.msra.mxu0 %v1857
  %1859 = vmatprep.subr.mxu0 0.0
  %v1860 = vand.u32 %v1843, 4294901760
  %1861 = vmatpush1.msra.mxu0 %v1860
  %1862 = vmatprep.subr.mxu0 0.0
  %1863 = vmatpush1.msra.mxu0 0.0
  %1864 = vmatprep.subr.mxu0 0.0
  %1865 = vmatpush1.msra.mxu0 0.0
  %1866 = vmatprep.subr.mxu0 0.0
  %1867 = vmatpush1.msra.mxu0 0.0
  %1868 = vmatprep.subr.mxu0 0.0
  %1869 = vmatpush1.msra.mxu0 0.0
  %1870 = vmatprep.subr.mxu0 0.0
  %1871 = vmatpush1.msra.mxu0 0.0
  %1872 = vmatprep.subr.mxu0 0.0
  %1873 = vmatpush1.msra.mxu0 0.0
  %1874 = vmatprep.subr.mxu0 0.0
  %1875 = vmatpush1.msra.mxu0 0.0
  %1876 = vmatprep.subr.mxu0 0.0
  %1877 = vmatpush1.msra.mxu0 0.0
  %1878 = vmatprep.subr.mxu0 0.0
  %1879 = vmatpush1.msra.mxu0 0.0
  %1880 = vmatprep.subr.mxu0 0.0
  %1881 = vmatpush1.msra.mxu0 0.0
  %1882 = vmatprep.subr.mxu0 0.0
  %1883 = vmatpush1.msra.mxu0 0.0
  %1884 = vmatprep.subr.mxu0 0.0
  %1885 = vmatpush1.msra.mxu0 0.0
  %1886 = vmatprep.subr.mxu0 0.0
  %1887 = vmatpush1.msra.mxu0 0.0
  %1888 = vmatprep.subr.mxu0 0.0
  %1889 = vmatpush1.msra.mxu0 0.0
  %1890 = vmatprep.subr.mxu0 0.0
  %1891 = vmatpush1.msra.mxu0 0.0
  %1892 = vmatprep.subr.mxu0 0.0
  %1893 = vmatpush1.msra.mxu0 0.0
  %1894 = vmatprep.subr.mxu0 0.0
  %1895 = vmatpush1.msra.mxu0 0.0
  %1896 = vmatprep.subr.mxu0 0.0
  %1897 = vmatpush1.msra.mxu0 0.0
  %1898 = vmatprep.subr.mxu0 0.0
  %1899 = vmatpush1.msra.mxu0 0.0
  %1900 = vmatprep.subr.mxu0 0.0
  %1901 = vmatpush1.msra.mxu0 0.0
  %1902 = vmatprep.subr.mxu0 0.0
  %1903 = vmatpush1.msra.mxu0 0.0
  %1904 = vmatprep.subr.mxu0 0.0
  %1905 = vmatpush1.msra.mxu0 0.0
  %1906 = vmatprep.subr.mxu0 0.0
  %1907 = vmatpush1.msra.mxu0 0.0
  %1908 = vmatprep.subr.mxu0 0.0
  %1909 = vmatpush1.msra.mxu0 0.0
  %1910 = vmatprep.subr.mxu0 0.0
  %1911 = vmatpush1.msra.mxu0 0.0
  %1912 = vmatprep.subr.mxu0 0.0
  %1913 = vmatpush1.msra.mxu0 0.0
  %1914 = vmatprep.subr.mxu0 0.0
  %1915 = vmatpush1.msra.mxu0 0.0
  %1916 = vmatprep.subr.mxu0 0.0
  %1917 = vmatpush1.msra.mxu0 0.0
  %1918 = vmatprep.subr.mxu0 0.0
  %1919 = vmatpush1.msra.mxu0 0.0
  %1920 = vmatprep.subr.mxu0 0.0
  %1921 = vmatpush1.msra.mxu0 0.0
  %1922 = vmatprep.mubr.f32.mxu0 0.0
  %v1923 = vand.u32 %v1854, 4294901760
  %v1924 = vsub.f32 %v1854, %v1923
  %v1925 = vand.u32 %v1924, 4294901760
  %v1926 = vsub.f32 %v1924, %v1925
  %v1927 = vand.u32 %v1926, 4294901760
  %1928 = vmatmul.mubr.f32.gmra.mrb[0].mxu0 %v1927
  %v1929 = vpop.f32.mrb[0].mxu0
  %v1930 = vadd.f32 %v1851, %v1929
  %v1931 = vpop.f32.mrb[0].mxu0
  %1932 = vdwg.mxu0
  %1933 = vmatprep.subr.mxu0 0.0
  %v1934 = vand.u32 %v1842, 4294901760
  %v1935 = vsub.f32 %v1842, %v1934
  %v1936 = vand.u32 %v1935, 4294901760
  %v1937 = vsub.f32 %v1935, %v1936
  %v1938 = vand.u32 %v1937, 4294901760
  %1939 = vmatpush1.msra.mxu0 %v1938
  %1940 = vmatprep.subr.mxu0 0.0
  %v1941 = vand.u32 %v1843, 4294901760
  %v1942 = vsub.f32 %v1843, %v1941
  %v1943 = vand.u32 %v1942, 4294901760
  %v1944 = vsub.f32 %v1942, %v1943
  %v1945 = vand.u32 %v1944, 4294901760
  %1946 = vmatpush1.msra.mxu0 %v1945
  %1947 = vmatprep.subr.mxu0 0.0
  %1948 = vmatpush1.msra.mxu0 0.0
  %1949 = vmatprep.subr.mxu0 0.0
  %1950 = vmatpush1.msra.mxu0 0.0
  %1951 = vmatprep.subr.mxu0 0.0
  %1952 = vmatpush1.msra.mxu0 0.0
  %1953 = vmatprep.subr.mxu0 0.0
  %1954 = vmatpush1.msra.mxu0 0.0
  %1955 = vmatprep.subr.mxu0 0.0
  %1956 = vmatpush1.msra.mxu0 0.0
  %1957 = vmatprep.subr.mxu0 0.0
  %1958 = vmatpush1.msra.mxu0 0.0
  %1959 = vmatprep.subr.mxu0 0.0
  %1960 = vmatpush1.msra.mxu0 0.0
  %1961 = vmatprep.subr.mxu0 0.0
  %1962 = vmatpush1.msra.mxu0 0.0
  %1963 = vmatprep.subr.mxu0 0.0
  %1964 = vmatpush1.msra.mxu0 0.0
  %1965 = vmatprep.subr.mxu0 0.0
  %1966 = vmatpush1.msra.mxu0 0.0
  %1967 = vmatprep.subr.mxu0 0.0
  %1968 = vmatpush1.msra.mxu0 0.0
  %1969 = vmatprep.subr.mxu0 0.0
  %1970 = vmatpush1.msra.mxu0 0.0
  %1971 = vmatprep.subr.mxu0 0.0
  %1972 = vmatpush1.msra.mxu0 0.0
  %1973 = vmatprep.subr.mxu0 0.0
  %1974 = vmatpush1.msra.mxu0 0.0
  %1975 = vmatprep.subr.mxu0 0.0
  %1976 = vmatpush1.msra.mxu0 0.0
  %1977 = vmatprep.subr.mxu0 0.0
  %1978 = vmatpush1.msra.mxu0 0.0
  %1979 = vmatprep.subr.mxu0 0.0
  %1980 = vmatpush1.msra.mxu0 0.0
  %1981 = vmatprep.subr.mxu0 0.0
  %1982 = vmatpush1.msra.mxu0 0.0
  %1983 = vmatprep.subr.mxu0 0.0
  %1984 = vmatpush1.msra.mxu0 0.0
  %1985 = vmatprep.subr.mxu0 0.0
  %1986 = vmatpush1.msra.mxu0 0.0
  %1987 = vmatprep.subr.mxu0 0.0
  %1988 = vmatpush1.msra.mxu0 0.0
  %1989 = vmatprep.subr.mxu0 0.0
  %1990 = vmatpush1.msra.mxu0 0.0
  %1991 = vmatprep.subr.mxu0 0.0
  %1992 = vmatpush1.msra.mxu0 0.0
  %1993 = vmatprep.subr.mxu0 0.0
  %1994 = vmatpush1.msra.mxu0 0.0
  %1995 = vmatprep.subr.mxu0 0.0
  %1996 = vmatpush1.msra.mxu0 0.0
  %1997 = vmatprep.subr.mxu0 0.0
  %1998 = vmatpush1.msra.mxu0 0.0
  %1999 = vmatprep.subr.mxu0 0.0
  %2000 = vmatpush1.msra.mxu0 0.0
  %2001 = vmatprep.subr.mxu0 0.0
  %2002 = vmatpush1.msra.mxu0 0.0
  %2003 = vmatprep.subr.mxu0 0.0
  %2004 = vmatpush1.msra.mxu0 0.0
  %2005 = vmatprep.subr.mxu0 0.0
  %2006 = vmatpush1.msra.mxu0 0.0
  %2007 = vmatprep.mubr.f32.mxu0 0.0
  %v2008 = vand.u32 %v1854, 4294901760
  %2009 = vmatmul.mubr.f32.gmra.mrb[0].mxu0 %v2008
  %v2010 = vpop.f32.mrb[0].mxu0
  %v2011 = vadd.f32 %v1930, %v2010
  %v2012 = vpop.f32.mrb[0].mxu0
  %2013 = vdwg.mxu0
  %2014 = vmatprep.subr.mxu0 0.0
  %v2015 = vand.u32 %v1842, 4294901760
  %v2016 = vsub.f32 %v1842, %v2015
  %2017 = vmatpush1.msra.mxu0 %v2016
  %2018 = vmatprep.subr.mxu0 0.0
  %v2019 = vand.u32 %v1843, 4294901760
  %v2020 = vsub.f32 %v1843, %v2019
  %2021 = vmatpush1.msra.mxu0 %v2020
  %2022 = vmatprep.subr.mxu0 0.0
  %2023 = vmatpush1.msra.mxu0 0.0
  %2024 = vmatprep.subr.mxu0 0.0
  %2025 = vmatpush1.msra.mxu0 0.0
  %2026 = vmatprep.subr.mxu0 0.0
  %2027 = vmatpush1.msra.mxu0 0.0
  %2028 = vmatprep.subr.mxu0 0.0
  %2029 = vmatpush1.msra.mxu0 0.0
  %2030 = vmatprep.subr.mxu0 0.0
  %2031 = vmatpush1.msra.mxu0 0.0
  %2032 = vmatprep.subr.mxu0 0.0
  %2033 = vmatpush1.msra.mxu0 0.0
  %2034 = vmatprep.subr.mxu0 0.0
  %2035 = vmatpush1.msra.mxu0 0.0
  %2036 = vmatprep.subr.mxu0 0.0
  %2037 = vmatpush1.msra.mxu0 0.0
  %2038 = vmatprep.subr.mxu0 0.0
  %2039 = vmatpush1.msra.mxu0 0.0
  %2040 = vmatprep.subr.mxu0 0.0
  %2041 = vmatpush1.msra.mxu0 0.0
  %2042 = vmatprep.subr.mxu0 0.0
  %2043 = vmatpush1.msra.mxu0 0.0
  %2044 = vmatprep.subr.mxu0 0.0
  %2045 = vmatpush1.msra.mxu0 0.0
  %2046 = vmatprep.subr.mxu0 0.0
  %2047 = vmatpush1.msra.mxu0 0.0
  %2048 = vmatprep.subr.mxu0 0.0
  %2049 = vmatpush1.msra.mxu0 0.0
  %2050 = vmatprep.subr.mxu0 0.0
  %2051 = vmatpush1.msra.mxu0 0.0
  %2052 = vmatprep.subr.mxu0 0.0
  %2053 = vmatpush1.msra.mxu0 0.0
  %2054 = vmatprep.subr.mxu0 0.0
  %2055 = vmatpush1.msra.mxu0 0.0
  %2056 = vmatprep.subr.mxu0 0.0
  %2057 = vmatpush1.msra.mxu0 0.0
  %2058 = vmatprep.subr.mxu0 0.0
  %2059 = vmatpush1.msra.mxu0 0.0
  %2060 = vmatprep.subr.mxu0 0.0
  %2061 = vmatpush1.msra.mxu0 0.0
  %2062 = vmatprep.subr.mxu0 0.0
  %2063 = vmatpush1.msra.mxu0 0.0
  %2064 = vmatprep.subr.mxu0 0.0
  %2065 = vmatpush1.msra.mxu0 0.0
  %2066 = vmatprep.subr.mxu0 0.0
  %2067 = vmatpush1.msra.mxu0 0.0
  %2068 = vmatprep.subr.mxu0 0.0
  %2069 = vmatpush1.msra.mxu0 0.0
  %2070 = vmatprep.subr.mxu0 0.0
  %2071 = vmatpush1.msra.mxu0 0.0
  %2072 = vmatprep.subr.mxu0 0.0
  %2073 = vmatpush1.msra.mxu0 0.0
  %2074 = vmatprep.subr.mxu0 0.0
  %2075 = vmatpush1.msra.mxu0 0.0
  %2076 = vmatprep.subr.mxu0 0.0
  %2077 = vmatpush1.msra.mxu0 0.0
  %2078 = vmatprep.subr.mxu0 0.0
  %2079 = vmatpush1.msra.mxu0 0.0
  %2080 = vmatprep.subr.mxu0 0.0
  %2081 = vmatpush1.msra.mxu0 0.0
  %2082 = vmatprep.mubr.f32.mxu0 0.0
  %v2083 = vand.u32 %v1854, 4294901760
  %v2084 = vsub.f32 %v1854, %v2083
  %2085 = vmatmul.mubr.f32.gmra.mrb[0].mxu0 %v2084
  %v2086 = vpop.f32.mrb[0].mxu0
  %v2087 = vadd.f32 %v2011, %v2086
  %v2088 = vpop.f32.mrb[0].mxu0
  %2089 = vdwg.mxu0
  %2090 = vmatprep.subr.mxu0 0.0
  %v2091 = vand.u32 %v1842, 4294901760
  %2092 = vmatpush1.msra.mxu0 %v2091
  %2093 = vmatprep.subr.mxu0 0.0
  %v2094 = vand.u32 %v1843, 4294901760
  %2095 = vmatpush1.msra.mxu0 %v2094
  %2096 = vmatprep.subr.mxu0 0.0
  %2097 = vmatpush1.msra.mxu0 0.0
  %2098 = vmatprep.subr.mxu0 0.0
  %2099 = vmatpush1.msra.mxu0 0.0
  %2100 = vmatprep.subr.mxu0 0.0
  %2101 = vmatpush1.msra.mxu0 0.0
  %2102 = vmatprep.subr.mxu0 0.0
  %2103 = vmatpush1.msra.mxu0 0.0
  %2104 = vmatprep.subr.mxu0 0.0
  %2105 = vmatpush1.msra.mxu0 0.0
  %2106 = vmatprep.subr.mxu0 0.0
  %2107 = vmatpush1.msra.mxu0 0.0
  %2108 = vmatprep.subr.mxu0 0.0
  %2109 = vmatpush1.msra.mxu0 0.0
  %2110 = vmatprep.subr.mxu0 0.0
  %2111 = vmatpush1.msra.mxu0 0.0
  %2112 = vmatprep.subr.mxu0 0.0
  %2113 = vmatpush1.msra.mxu0 0.0
  %2114 = vmatprep.subr.mxu0 0.0
  %2115 = vmatpush1.msra.mxu0 0.0
  %2116 = vmatprep.subr.mxu0 0.0
  %2117 = vmatpush1.msra.mxu0 0.0
  %2118 = vmatprep.subr.mxu0 0.0
  %2119 = vmatpush1.msra.mxu0 0.0
  %2120 = vmatprep.subr.mxu0 0.0
  %2121 = vmatpush1.msra.mxu0 0.0
  %2122 = vmatprep.subr.mxu0 0.0
  %2123 = vmatpush1.msra.mxu0 0.0
  %2124 = vmatprep.subr.mxu0 0.0
  %2125 = vmatpush1.msra.mxu0 0.0
  %2126 = vmatprep.subr.mxu0 0.0
  %2127 = vmatpush1.msra.mxu0 0.0
  %2128 = vmatprep.subr.mxu0 0.0
  %2129 = vmatpush1.msra.mxu0 0.0
  %2130 = vmatprep.subr.mxu0 0.0
  %2131 = vmatpush1.msra.mxu0 0.0
  %2132 = vmatprep.subr.mxu0 0.0
  %2133 = vmatpush1.msra.mxu0 0.0
  %2134 = vmatprep.subr.mxu0 0.0
  %2135 = vmatpush1.msra.mxu0 0.0
  %2136 = vmatprep.subr.mxu0 0.0
  %2137 = vmatpush1.msra.mxu0 0.0
  %2138 = vmatprep.subr.mxu0 0.0
  %2139 = vmatpush1.msra.mxu0 0.0
  %2140 = vmatprep.subr.mxu0 0.0
  %2141 = vmatpush1.msra.mxu0 0.0
  %2142 = vmatprep.subr.mxu0 0.0
  %2143 = vmatpush1.msra.mxu0 0.0
  %2144 = vmatprep.subr.mxu0 0.0
  %2145 = vmatpush1.msra.mxu0 0.0
  %2146 = vmatprep.subr.mxu0 0.0
  %2147 = vmatpush1.msra.mxu0 0.0
  %2148 = vmatprep.subr.mxu0 0.0
  %2149 = vmatpush1.msra.mxu0 0.0
  %2150 = vmatprep.subr.mxu0 0.0
  %2151 = vmatpush1.msra.mxu0 0.0
  %2152 = vmatprep.subr.mxu0 0.0
  %2153 = vmatpush1.msra.mxu0 0.0
  %2154 = vmatprep.subr.mxu0 0.0
  %2155 = vmatpush1.msra.mxu0 0.0
  %2156 = vmatprep.mubr.f32.mxu0 0.0
  %v2157 = vand.u32 %v1854, 4294901760
  %v2158 = vsub.f32 %v1854, %v2157
  %v2159 = vand.u32 %v2158, 4294901760
  %2160 = vmatmul.mubr.f32.gmra.mrb[0].mxu0 %v2159
  %v2161 = vpop.f32.mrb[0].mxu0
  %v2162 = vadd.f32 %v2087, %v2161
  %v2163 = vpop.f32.mrb[0].mxu0
  %2164 = vdwg.mxu0
  %2165 = vmatprep.subr.mxu0 0.0
  %v2166 = vand.u32 %v1842, 4294901760
  %v2167 = vsub.f32 %v1842, %v2166
  %v2168 = vand.u32 %v2167, 4294901760
  %2169 = vmatpush1.msra.mxu0 %v2168
  %2170 = vmatprep.subr.mxu0 0.0
  %v2171 = vand.u32 %v1843, 4294901760
  %v2172 = vsub.f32 %v1843, %v2171
  %v2173 = vand.u32 %v2172, 4294901760
  %2174 = vmatpush1.msra.mxu0 %v2173
  %2175 = vmatprep.subr.mxu0 0.0
  %2176 = vmatpush1.msra.mxu0 0.0
  %2177 = vmatprep.subr.mxu0 0.0
  %2178 = vmatpush1.msra.mxu0 0.0
  %2179 = vmatprep.subr.mxu0 0.0
  %2180 = vmatpush1.msra.mxu0 0.0
  %2181 = vmatprep.subr.mxu0 0.0
  %2182 = vmatpush1.msra.mxu0 0.0
  %2183 = vmatprep.subr.mxu0 0.0
  %2184 = vmatpush1.msra.mxu0 0.0
  %2185 = vmatprep.subr.mxu0 0.0
  %2186 = vmatpush1.msra.mxu0 0.0
  %2187 = vmatprep.subr.mxu0 0.0
  %2188 = vmatpush1.msra.mxu0 0.0
  %2189 = vmatprep.subr.mxu0 0.0
  %2190 = vmatpush1.msra.mxu0 0.0
  %2191 = vmatprep.subr.mxu0 0.0
  %2192 = vmatpush1.msra.mxu0 0.0
  %2193 = vmatprep.subr.mxu0 0.0
  %2194 = vmatpush1.msra.mxu0 0.0
  %2195 = vmatprep.subr.mxu0 0.0
  %2196 = vmatpush1.msra.mxu0 0.0
  %2197 = vmatprep.subr.mxu0 0.0
  %2198 = vmatpush1.msra.mxu0 0.0
  %2199 = vmatprep.subr.mxu0 0.0
  %2200 = vmatpush1.msra.mxu0 0.0
  %2201 = vmatprep.subr.mxu0 0.0
  %2202 = vmatpush1.msra.mxu0 0.0
  %2203 = vmatprep.subr.mxu0 0.0
  %2204 = vmatpush1.msra.mxu0 0.0
  %2205 = vmatprep.subr.mxu0 0.0
  %2206 = vmatpush1.msra.mxu0 0.0
  %2207 = vmatprep.subr.mxu0 0.0
  %2208 = vmatpush1.msra.mxu0 0.0
  %2209 = vmatprep.subr.mxu0 0.0
  %2210 = vmatpush1.msra.mxu0 0.0
  %2211 = vmatprep.subr.mxu0 0.0
  %2212 = vmatpush1.msra.mxu0 0.0
  %2213 = vmatprep.subr.mxu0 0.0
  %2214 = vmatpush1.msra.mxu0 0.0
  %2215 = vmatprep.subr.mxu0 0.0
  %2216 = vmatpush1.msra.mxu0 0.0
  %2217 = vmatprep.subr.mxu0 0.0
  %2218 = vmatpush1.msra.mxu0 0.0
  %2219 = vmatprep.subr.mxu0 0.0
  %2220 = vmatpush1.msra.mxu0 0.0
  %2221 = vmatprep.subr.mxu0 0.0
  %2222 = vmatpush1.msra.mxu0 0.0
  %2223 = vmatprep.subr.mxu0 0.0
  %2224 = vmatpush1.msra.mxu0 0.0
  %2225 = vmatprep.subr.mxu0 0.0
  %2226 = vmatpush1.msra.mxu0 0.0
  %2227 = vmatprep.subr.mxu0 0.0
  %2228 = vmatpush1.msra.mxu0 0.0
  %2229 = vmatprep.subr.mxu0 0.0
  %2230 = vmatpush1.msra.mxu0 0.0
  %2231 = vmatprep.subr.mxu0 0.0
  %2232 = vmatpush1.msra.mxu0 0.0
  %2233 = vmatprep.subr.mxu0 0.0
  %2234 = vmatpush1.msra.mxu0 0.0
  %2235 = vmatprep.mubr.f32.mxu0 0.0
  %v2236 = vand.u32 %v1854, 4294901760
  %2237 = vmatmul.mubr.f32.gmra.mrb[0].mxu0 %v2236
  %v2238 = vpop.f32.mrb[0].mxu0
  %v2239 = vadd.f32 %v2162, %v2238
  %v2240 = vpop.f32.mrb[0].mxu0
  %2241 = vdwg.mxu0
  %2242 = vmatprep.subr.mxu0 0.0
  %v2243 = vand.u32 %v1842, 4294901760
  %2244 = vmatpush1.msra.mxu0 %v2243
  %2245 = vmatprep.subr.mxu0 0.0
  %v2246 = vand.u32 %v1843, 4294901760
  %2247 = vmatpush1.msra.mxu0 %v2246
  %2248 = vmatprep.subr.mxu0 0.0
  %2249 = vmatpush1.msra.mxu0 0.0
  %2250 = vmatprep.subr.mxu0 0.0
  %2251 = vmatpush1.msra.mxu0 0.0
  %2252 = vmatprep.subr.mxu0 0.0
  %2253 = vmatpush1.msra.mxu0 0.0
  %2254 = vmatprep.subr.mxu0 0.0
  %2255 = vmatpush1.msra.mxu0 0.0
  %2256 = vmatprep.subr.mxu0 0.0
  %2257 = vmatpush1.msra.mxu0 0.0
  %2258 = vmatprep.subr.mxu0 0.0
  %2259 = vmatpush1.msra.mxu0 0.0
  %2260 = vmatprep.subr.mxu0 0.0
  %2261 = vmatpush1.msra.mxu0 0.0
  %2262 = vmatprep.subr.mxu0 0.0
  %2263 = vmatpush1.msra.mxu0 0.0
  %2264 = vmatprep.subr.mxu0 0.0
  %2265 = vmatpush1.msra.mxu0 0.0
  %2266 = vmatprep.subr.mxu0 0.0
  %2267 = vmatpush1.msra.mxu0 0.0
  %2268 = vmatprep.subr.mxu0 0.0
  %2269 = vmatpush1.msra.mxu0 0.0
  %2270 = vmatprep.subr.mxu0 0.0
  %2271 = vmatpush1.msra.mxu0 0.0
  %2272 = vmatprep.subr.mxu0 0.0
  %2273 = vmatpush1.msra.mxu0 0.0
  %2274 = vmatprep.subr.mxu0 0.0
  %2275 = vmatpush1.msra.mxu0 0.0
  %2276 = vmatprep.subr.mxu0 0.0
  %2277 = vmatpush1.msra.mxu0 0.0
  %2278 = vmatprep.subr.mxu0 0.0
  %2279 = vmatpush1.msra.mxu0 0.0
  %2280 = vmatprep.subr.mxu0 0.0
  %2281 = vmatpush1.msra.mxu0 0.0
  %2282 = vmatprep.subr.mxu0 0.0
  %2283 = vmatpush1.msra.mxu0 0.0
  %2284 = vmatprep.subr.mxu0 0.0
  %2285 = vmatpush1.msra.mxu0 0.0
  %2286 = vmatprep.subr.mxu0 0.0
  %2287 = vmatpush1.msra.mxu0 0.0
  %2288 = vmatprep.subr.mxu0 0.0
  %2289 = vmatpush1.msra.mxu0 0.0
  %2290 = vmatprep.subr.mxu0 0.0
  %2291 = vmatpush1.msra.mxu0 0.0
  %2292 = vmatprep.subr.mxu0 0.0
  %2293 = vmatpush1.msra.mxu0 0.0
  %2294 = vmatprep.subr.mxu0 0.0
  %2295 = vmatpush1.msra.mxu0 0.0
  %2296 = vmatprep.subr.mxu0 0.0
  %2297 = vmatpush1.msra.mxu0 0.0
  %2298 = vmatprep.subr.mxu0 0.0
  %2299 = vmatpush1.msra.mxu0 0.0
  %2300 = vmatprep.subr.mxu0 0.0
  %2301 = vmatpush1.msra.mxu0 0.0
  %2302 = vmatprep.subr.mxu0 0.0
  %2303 = vmatpush1.msra.mxu0 0.0
  %2304 = vmatprep.subr.mxu0 0.0
  %2305 = vmatpush1.msra.mxu0 0.0
  %2306 = vmatprep.subr.mxu0 0.0
  %2307 = vmatpush1.msra.mxu0 0.0
  %2308 = vmatprep.mubr.f32.mxu0 0.0
  %v2309 = vand.u32 %v1854, 4294901760
  %2310 = vmatmul.mubr.f32.gmra.mrb[0].mxu0 %v2309
  %v2311 = vpop.f32.mrb[0].mxu0
  %v2312 = vadd.f32 %v2239, %v2311
  %v2313 = vpop.f32.mrb[0].mxu0
  %2314 = vdwg.mxu0
  %v2315 = vmul.f32 %v2312, 0.01
  %v2316 = vmax.f32 %v2312, %v2315
  %s2317 = scalar_lea.vmem %s1, 64
  %v2318 = vld [vmem:[%s2317] sm:$0xff]
  %s2319 = scalar_lea.vmem %s2, 64
  %v2320 = vld [vmem:[%s2319] sm:$0xff]
  %2322 = vset.pattern.permute.xlu0 0
  %2323 = vperm.xlu0 %2322, %v2320
  %v2324 = vpop.permute.xlu0 %2323
  %vm2326 = vcmask 64512
  %v2328 = vsel %vm2326, %v2318, 0
  %2330 = vmatprep.subr.mxu0 0.0
  %v2331 = vand.u32 %v2316, 4294901760
  %2332 = vmatpush1.msra.mxu0 %v2331
  %2333 = vmatprep.subr.mxu0 0.0
  %2334 = vmatpush1.msra.mxu0 0.0
  %2335 = vmatprep.subr.mxu0 0.0
  %2336 = vmatpush1.msra.mxu0 0.0
  %2337 = vmatprep.subr.mxu0 0.0
  %2338 = vmatpush1.msra.mxu0 0.0
  %2339 = vmatprep.subr.mxu0 0.0
  %2340 = vmatpush1.msra.mxu0 0.0
  %2341 = vmatprep.subr.mxu0 0.0
  %2342 = vmatpush1.msra.mxu0 0.0
  %2343 = vmatprep.subr.mxu0 0.0
  %2344 = vmatpush1.msra.mxu0 0.0
  %2345 = vmatprep.subr.mxu0 0.0
  %2346 = vmatpush1.msra.mxu0 0.0
  %2347 = vmatprep.subr.mxu0 0.0
  %2348 = vmatpush1.msra.mxu0 0.0
  %2349 = vmatprep.subr.mxu0 0.0
  %2350 = vmatpush1.msra.mxu0 0.0
  %2351 = vmatprep.subr.mxu0 0.0
  %2352 = vmatpush1.msra.mxu0 0.0
  %2353 = vmatprep.subr.mxu0 0.0
  %2354 = vmatpush1.msra.mxu0 0.0
  %2355 = vmatprep.subr.mxu0 0.0
  %2356 = vmatpush1.msra.mxu0 0.0
  %2357 = vmatprep.subr.mxu0 0.0
  %2358 = vmatpush1.msra.mxu0 0.0
  %2359 = vmatprep.subr.mxu0 0.0
  %2360 = vmatpush1.msra.mxu0 0.0
  %2361 = vmatprep.subr.mxu0 0.0
  %2362 = vmatpush1.msra.mxu0 0.0
  %2363 = vmatprep.subr.mxu0 0.0
  %2364 = vmatpush1.msra.mxu0 0.0
  %2365 = vmatprep.subr.mxu0 0.0
  %2366 = vmatpush1.msra.mxu0 0.0
  %2367 = vmatprep.subr.mxu0 0.0
  %2368 = vmatpush1.msra.mxu0 0.0
  %2369 = vmatprep.subr.mxu0 0.0
  %2370 = vmatpush1.msra.mxu0 0.0
  %2371 = vmatprep.subr.mxu0 0.0
  %2372 = vmatpush1.msra.mxu0 0.0
  %2373 = vmatprep.subr.mxu0 0.0
  %2374 = vmatpush1.msra.mxu0 0.0
  %2375 = vmatprep.subr.mxu0 0.0
  %2376 = vmatpush1.msra.mxu0 0.0
  %2377 = vmatprep.subr.mxu0 0.0
  %2378 = vmatpush1.msra.mxu0 0.0
  %2379 = vmatprep.subr.mxu0 0.0
  %2380 = vmatpush1.msra.mxu0 0.0
  %2381 = vmatprep.subr.mxu0 0.0
  %2382 = vmatpush1.msra.mxu0 0.0
  %2383 = vmatprep.subr.mxu0 0.0
  %2384 = vmatpush1.msra.mxu0 0.0
  %2385 = vmatprep.subr.mxu0 0.0
  %2386 = vmatpush1.msra.mxu0 0.0
  %2387 = vmatprep.subr.mxu0 0.0
  %2388 = vmatpush1.msra.mxu0 0.0
  %2389 = vmatprep.subr.mxu0 0.0
  %2390 = vmatpush1.msra.mxu0 0.0
  %2391 = vmatprep.subr.mxu0 0.0
  %2392 = vmatpush1.msra.mxu0 0.0
  %2393 = vmatprep.subr.mxu0 0.0
  %2394 = vmatpush1.msra.mxu0 0.0
  %2395 = vmatprep.mubr.f32.mxu0 0.0
  %v2396 = vand.u32 %v2328, 4294901760
  %v2397 = vsub.f32 %v2328, %v2396
  %v2398 = vand.u32 %v2397, 4294901760
  %v2399 = vsub.f32 %v2397, %v2398
  %v2400 = vand.u32 %v2399, 4294901760
  %2401 = vmatmul.mubr.f32.gmra.mrb[0].mxu0 %v2400
  %v2402 = vpop.f32.mrb[0].mxu0
  %v2403 = vadd.f32 %v2324, %v2402
  %v2404 = vpop.f32.mrb[0].mxu0
  %2405 = vdwg.mxu0
  %2406 = vmatprep.subr.mxu0 0.0
  %v2407 = vand.u32 %v2316, 4294901760
  %v2408 = vsub.f32 %v2316, %v2407
  %v2409 = vand.u32 %v2408, 4294901760
  %v2410 = vsub.f32 %v2408, %v2409
  %v2411 = vand.u32 %v2410, 4294901760
  %2412 = vmatpush1.msra.mxu0 %v2411
  %2413 = vmatprep.subr.mxu0 0.0
  %2414 = vmatpush1.msra.mxu0 0.0
  %2415 = vmatprep.subr.mxu0 0.0
  %2416 = vmatpush1.msra.mxu0 0.0
  %2417 = vmatprep.subr.mxu0 0.0
  %2418 = vmatpush1.msra.mxu0 0.0
  %2419 = vmatprep.subr.mxu0 0.0
  %2420 = vmatpush1.msra.mxu0 0.0
  %2421 = vmatprep.subr.mxu0 0.0
  %2422 = vmatpush1.msra.mxu0 0.0
  %2423 = vmatprep.subr.mxu0 0.0
  %2424 = vmatpush1.msra.mxu0 0.0
  %2425 = vmatprep.subr.mxu0 0.0
  %2426 = vmatpush1.msra.mxu0 0.0
  %2427 = vmatprep.subr.mxu0 0.0
  %2428 = vmatpush1.msra.mxu0 0.0
  %2429 = vmatprep.subr.mxu0 0.0
  %2430 = vmatpush1.msra.mxu0 0.0
  %2431 = vmatprep.subr.mxu0 0.0
  %2432 = vmatpush1.msra.mxu0 0.0
  %2433 = vmatprep.subr.mxu0 0.0
  %2434 = vmatpush1.msra.mxu0 0.0
  %2435 = vmatprep.subr.mxu0 0.0
  %2436 = vmatpush1.msra.mxu0 0.0
  %2437 = vmatprep.subr.mxu0 0.0
  %2438 = vmatpush1.msra.mxu0 0.0
  %2439 = vmatprep.subr.mxu0 0.0
  %2440 = vmatpush1.msra.mxu0 0.0
  %2441 = vmatprep.subr.mxu0 0.0
  %2442 = vmatpush1.msra.mxu0 0.0
  %2443 = vmatprep.subr.mxu0 0.0
  %2444 = vmatpush1.msra.mxu0 0.0
  %2445 = vmatprep.subr.mxu0 0.0
  %2446 = vmatpush1.msra.mxu0 0.0
  %2447 = vmatprep.subr.mxu0 0.0
  %2448 = vmatpush1.msra.mxu0 0.0
  %2449 = vmatprep.subr.mxu0 0.0
  %2450 = vmatpush1.msra.mxu0 0.0
  %2451 = vmatprep.subr.mxu0 0.0
  %2452 = vmatpush1.msra.mxu0 0.0
  %2453 = vmatprep.subr.mxu0 0.0
  %2454 = vmatpush1.msra.mxu0 0.0
  %2455 = vmatprep.subr.mxu0 0.0
  %2456 = vmatpush1.msra.mxu0 0.0
  %2457 = vmatprep.subr.mxu0 0.0
  %2458 = vmatpush1.msra.mxu0 0.0
  %2459 = vmatprep.subr.mxu0 0.0
  %2460 = vmatpush1.msra.mxu0 0.0
  %2461 = vmatprep.subr.mxu0 0.0
  %2462 = vmatpush1.msra.mxu0 0.0
  %2463 = vmatprep.subr.mxu0 0.0
  %2464 = vmatpush1.msra.mxu0 0.0
  %2465 = vmatprep.subr.mxu0 0.0
  %2466 = vmatpush1.msra.mxu0 0.0
  %2467 = vmatprep.subr.mxu0 0.0
  %2468 = vmatpush1.msra.mxu0 0.0
  %2469 = vmatprep.subr.mxu0 0.0
  %2470 = vmatpush1.msra.mxu0 0.0
  %2471 = vmatprep.subr.mxu0 0.0
  %2472 = vmatpush1.msra.mxu0 0.0
  %2473 = vmatprep.subr.mxu0 0.0
  %2474 = vmatpush1.msra.mxu0 0.0
  %2475 = vmatprep.mubr.f32.mxu0 0.0
  %v2476 = vand.u32 %v2328, 4294901760
  %2477 = vmatmul.mubr.f32.gmra.mrb[0].mxu0 %v2476
  %v2478 = vpop.f32.mrb[0].mxu0
  %v2479 = vadd.f32 %v2403, %v2478
  %v2480 = vpop.f32.mrb[0].mxu0
  %2481 = vdwg.mxu0
  %2482 = vmatprep.subr.mxu0 0.0
  %v2483 = vand.u32 %v2316, 4294901760
  %v2484 = vsub.f32 %v2316, %v2483
  %2485 = vmatpush1.msra.mxu0 %v2484
  %2486 = vmatprep.subr.mxu0 0.0
  %2487 = vmatpush1.msra.mxu0 0.0
  %2488 = vmatprep.subr.mxu0 0.0
  %2489 = vmatpush1.msra.mxu0 0.0
  %2490 = vmatprep.subr.mxu0 0.0
  %2491 = vmatpush1.msra.mxu0 0.0
  %2492 = vmatprep.subr.mxu0 0.0
  %2493 = vmatpush1.msra.mxu0 0.0
  %2494 = vmatprep.subr.mxu0 0.0
  %2495 = vmatpush1.msra.mxu0 0.0
  %2496 = vmatprep.subr.mxu0 0.0
  %2497 = vmatpush1.msra.mxu0 0.0
  %2498 = vmatprep.subr.mxu0 0.0
  %2499 = vmatpush1.msra.mxu0 0.0
  %2500 = vmatprep.subr.mxu0 0.0
  %2501 = vmatpush1.msra.mxu0 0.0
  %2502 = vmatprep.subr.mxu0 0.0
  %2503 = vmatpush1.msra.mxu0 0.0
  %2504 = vmatprep.subr.mxu0 0.0
  %2505 = vmatpush1.msra.mxu0 0.0
  %2506 = vmatprep.subr.mxu0 0.0
  %2507 = vmatpush1.msra.mxu0 0.0
  %2508 = vmatprep.subr.mxu0 0.0
  %2509 = vmatpush1.msra.mxu0 0.0
  %2510 = vmatprep.subr.mxu0 0.0
  %2511 = vmatpush1.msra.mxu0 0.0
  %2512 = vmatprep.subr.mxu0 0.0
  %2513 = vmatpush1.msra.mxu0 0.0
  %2514 = vmatprep.subr.mxu0 0.0
  %2515 = vmatpush1.msra.mxu0 0.0
  %2516 = vmatprep.subr.mxu0 0.0
  %2517 = vmatpush1.msra.mxu0 0.0
  %2518 = vmatprep.subr.mxu0 0.0
  %2519 = vmatpush1.msra.mxu0 0.0
  %2520 = vmatprep.subr.mxu0 0.0
  %2521 = vmatpush1.msra.mxu0 0.0
  %2522 = vmatprep.subr.mxu0 0.0
  %2523 = vmatpush1.msra.mxu0 0.0
  %2524 = vmatprep.subr.mxu0 0.0
  %2525 = vmatpush1.msra.mxu0 0.0
  %2526 = vmatprep.subr.mxu0 0.0
  %2527 = vmatpush1.msra.mxu0 0.0
  %2528 = vmatprep.subr.mxu0 0.0
  %2529 = vmatpush1.msra.mxu0 0.0
  %2530 = vmatprep.subr.mxu0 0.0
  %2531 = vmatpush1.msra.mxu0 0.0
  %2532 = vmatprep.subr.mxu0 0.0
  %2533 = vmatpush1.msra.mxu0 0.0
  %2534 = vmatprep.subr.mxu0 0.0
  %2535 = vmatpush1.msra.mxu0 0.0
  %2536 = vmatprep.subr.mxu0 0.0
  %2537 = vmatpush1.msra.mxu0 0.0
  %2538 = vmatprep.subr.mxu0 0.0
  %2539 = vmatpush1.msra.mxu0 0.0
  %2540 = vmatprep.subr.mxu0 0.0
  %2541 = vmatpush1.msra.mxu0 0.0
  %2542 = vmatprep.subr.mxu0 0.0
  %2543 = vmatpush1.msra.mxu0 0.0
  %2544 = vmatprep.subr.mxu0 0.0
  %2545 = vmatpush1.msra.mxu0 0.0
  %2546 = vmatprep.subr.mxu0 0.0
  %2547 = vmatpush1.msra.mxu0 0.0
  %2548 = vmatprep.mubr.f32.mxu0 0.0
  %v2549 = vand.u32 %v2328, 4294901760
  %v2550 = vsub.f32 %v2328, %v2549
  %2551 = vmatmul.mubr.f32.gmra.mrb[0].mxu0 %v2550
  %v2552 = vpop.f32.mrb[0].mxu0
  %v2553 = vadd.f32 %v2479, %v2552
  %v2554 = vpop.f32.mrb[0].mxu0
  %2555 = vdwg.mxu0
  %2556 = vmatprep.subr.mxu0 0.0
  %v2557 = vand.u32 %v2316, 4294901760
  %2558 = vmatpush1.msra.mxu0 %v2557
  %2559 = vmatprep.subr.mxu0 0.0
  %2560 = vmatpush1.msra.mxu0 0.0
  %2561 = vmatprep.subr.mxu0 0.0
  %2562 = vmatpush1.msra.mxu0 0.0
  %2563 = vmatprep.subr.mxu0 0.0
  %2564 = vmatpush1.msra.mxu0 0.0
  %2565 = vmatprep.subr.mxu0 0.0
  %2566 = vmatpush1.msra.mxu0 0.0
  %2567 = vmatprep.subr.mxu0 0.0
  %2568 = vmatpush1.msra.mxu0 0.0
  %2569 = vmatprep.subr.mxu0 0.0
  %2570 = vmatpush1.msra.mxu0 0.0
  %2571 = vmatprep.subr.mxu0 0.0
  %2572 = vmatpush1.msra.mxu0 0.0
  %2573 = vmatprep.subr.mxu0 0.0
  %2574 = vmatpush1.msra.mxu0 0.0
  %2575 = vmatprep.subr.mxu0 0.0
  %2576 = vmatpush1.msra.mxu0 0.0
  %2577 = vmatprep.subr.mxu0 0.0
  %2578 = vmatpush1.msra.mxu0 0.0
  %2579 = vmatprep.subr.mxu0 0.0
  %2580 = vmatpush1.msra.mxu0 0.0
  %2581 = vmatprep.subr.mxu0 0.0
  %2582 = vmatpush1.msra.mxu0 0.0
  %2583 = vmatprep.subr.mxu0 0.0
  %2584 = vmatpush1.msra.mxu0 0.0
  %2585 = vmatprep.subr.mxu0 0.0
  %2586 = vmatpush1.msra.mxu0 0.0
  %2587 = vmatprep.subr.mxu0 0.0
  %2588 = vmatpush1.msra.mxu0 0.0
  %2589 = vmatprep.subr.mxu0 0.0
  %2590 = vmatpush1.msra.mxu0 0.0
  %2591 = vmatprep.subr.mxu0 0.0
  %2592 = vmatpush1.msra.mxu0 0.0
  %2593 = vmatprep.subr.mxu0 0.0
  %2594 = vmatpush1.msra.mxu0 0.0
  %2595 = vmatprep.subr.mxu0 0.0
  %2596 = vmatpush1.msra.mxu0 0.0
  %2597 = vmatprep.subr.mxu0 0.0
  %2598 = vmatpush1.msra.mxu0 0.0
  %2599 = vmatprep.subr.mxu0 0.0
  %2600 = vmatpush1.msra.mxu0 0.0
  %2601 = vmatprep.subr.mxu0 0.0
  %2602 = vmatpush1.msra.mxu0 0.0
  %2603 = vmatprep.subr.mxu0 0.0
  %2604 = vmatpush1.msra.mxu0 0.0
  %2605 = vmatprep.subr.mxu0 0.0
  %2606 = vmatpush1.msra.mxu0 0.0
  %2607 = vmatprep.subr.mxu0 0.0
  %2608 = vmatpush1.msra.mxu0 0.0
  %2609 = vmatprep.subr.mxu0 0.0
  %2610 = vmatpush1.msra.mxu0 0.0
  %2611 = vmatprep.subr.mxu0 0.0
  %2612 = vmatpush1.msra.mxu0 0.0
  %2613 = vmatprep.subr.mxu0 0.0
  %2614 = vmatpush1.msra.mxu0 0.0
  %2615 = vmatprep.subr.mxu0 0.0
  %2616 = vmatpush1.msra.mxu0 0.0
  %2617 = vmatprep.subr.mxu0 0.0
  %2618 = vmatpush1.msra.mxu0 0.0
  %2619 = vmatprep.subr.mxu0 0.0
  %2620 = vmatpush1.msra.mxu0 0.0
  %2621 = vmatprep.mubr.f32.mxu0 0.0
  %v2622 = vand.u32 %v2328, 4294901760
  %v2623 = vsub.f32 %v2328, %v2622
  %v2624 = vand.u32 %v2623, 4294901760
  %2625 = vmatmul.mubr.f32.gmra.mrb[0].mxu0 %v2624
  %v2626 = vpop.f32.mrb[0].mxu0
  %v2627 = vadd.f32 %v2553, %v2626
  %v2628 = vpop.f32.mrb[0].mxu0
  %2629 = vdwg.mxu0
  %2630 = vmatprep.subr.mxu0 0.0
  %v2631 = vand.u32 %v2316, 4294901760
  %v2632 = vsub.f32 %v2316, %v2631
  %v2633 = vand.u32 %v2632, 4294901760
  %2634 = vmatpush1.msra.mxu0 %v2633
  %2635 = vmatprep.subr.mxu0 0.0
  %2636 = vmatpush1.msra.mxu0 0.0
  %2637 = vmatprep.subr.mxu0 0.0
  %2638 = vmatpush1.msra.mxu0 0.0
  %2639 = vmatprep.subr.mxu0 0.0
  %2640 = vmatpush1.msra.mxu0 0.0
  %2641 = vmatprep.subr.mxu0 0.0
  %2642 = vmatpush1.msra.mxu0 0.0
  %2643 = vmatprep.subr.mxu0 0.0
  %2644 = vmatpush1.msra.mxu0 0.0
  %2645 = vmatprep.subr.mxu0 0.0
  %2646 = vmatpush1.msra.mxu0 0.0
  %2647 = vmatprep.subr.mxu0 0.0
  %2648 = vmatpush1.msra.mxu0 0.0
  %2649 = vmatprep.subr.mxu0 0.0
  %2650 = vmatpush1.msra.mxu0 0.0
  %2651 = vmatprep.subr.mxu0 0.0
  %2652 = vmatpush1.msra.mxu0 0.0
  %2653 = vmatprep.subr.mxu0 0.0
  %2654 = vmatpush1.msra.mxu0 0.0
  %2655 = vmatprep.subr.mxu0 0.0
  %2656 = vmatpush1.msra.mxu0 0.0
  %2657 = vmatprep.subr.mxu0 0.0
  %2658 = vmatpush1.msra.mxu0 0.0
  %2659 = vmatprep.subr.mxu0 0.0
  %2660 = vmatpush1.msra.mxu0 0.0
  %2661 = vmatprep.subr.mxu0 0.0
  %2662 = vmatpush1.msra.mxu0 0.0
  %2663 = vmatprep.subr.mxu0 0.0
  %2664 = vmatpush1.msra.mxu0 0.0
  %2665 = vmatprep.subr.mxu0 0.0
  %2666 = vmatpush1.msra.mxu0 0.0
  %2667 = vmatprep.subr.mxu0 0.0
  %2668 = vmatpush1.msra.mxu0 0.0
  %2669 = vmatprep.subr.mxu0 0.0
  %2670 = vmatpush1.msra.mxu0 0.0
  %2671 = vmatprep.subr.mxu0 0.0
  %2672 = vmatpush1.msra.mxu0 0.0
  %2673 = vmatprep.subr.mxu0 0.0
  %2674 = vmatpush1.msra.mxu0 0.0
  %2675 = vmatprep.subr.mxu0 0.0
  %2676 = vmatpush1.msra.mxu0 0.0
  %2677 = vmatprep.subr.mxu0 0.0
  %2678 = vmatpush1.msra.mxu0 0.0
  %2679 = vmatprep.subr.mxu0 0.0
  %2680 = vmatpush1.msra.mxu0 0.0
  %2681 = vmatprep.subr.mxu0 0.0
  %2682 = vmatpush1.msra.mxu0 0.0
  %2683 = vmatprep.subr.mxu0 0.0
  %2684 = vmatpush1.msra.mxu0 0.0
  %2685 = vmatprep.subr.mxu0 0.0
  %2686 = vmatpush1.msra.mxu0 0.0
  %2687 = vmatprep.subr.mxu0 0.0
  %2688 = vmatpush1.msra.mxu0 0.0
  %2689 = vmatprep.subr.mxu0 0.0
  %2690 = vmatpush1.msra.mxu0 0.0
  %2691 = vmatprep.subr.mxu0 0.0
  %2692 = vmatpush1.msra.mxu0 0.0
  %2693 = vmatprep.subr.mxu0 0.0
  %2694 = vmatpush1.msra.mxu0 0.0
  %2695 = vmatprep.subr.mxu0 0.0
  %2696 = vmatpush1.msra.mxu0 0.0
  %2697 = vmatprep.mubr.f32.mxu0 0.0
  %v2698 = vand.u32 %v2328, 4294901760
  %2699 = vmatmul.mubr.f32.gmra.mrb[0].mxu0 %v2698
  %v2700 = vpop.f32.mrb[0].mxu0
  %v2701 = vadd.f32 %v2627, %v2700
  %v2702 = vpop.f32.mrb[0].mxu0
  %2703 = vdwg.mxu0
  %2704 = vmatprep.subr.mxu0 0.0
  %v2705 = vand.u32 %v2316, 4294901760
  %2706 = vmatpush1.msra.mxu0 %v2705
  %2707 = vmatprep.subr.mxu0 0.0
  %2708 = vmatpush1.msra.mxu0 0.0
  %2709 = vmatprep.subr.mxu0 0.0
  %2710 = vmatpush1.msra.mxu0 0.0
  %2711 = vmatprep.subr.mxu0 0.0
  %2712 = vmatpush1.msra.mxu0 0.0
  %2713 = vmatprep.subr.mxu0 0.0
  %2714 = vmatpush1.msra.mxu0 0.0
  %2715 = vmatprep.subr.mxu0 0.0
  %2716 = vmatpush1.msra.mxu0 0.0
  %2717 = vmatprep.subr.mxu0 0.0
  %2718 = vmatpush1.msra.mxu0 0.0
  %2719 = vmatprep.subr.mxu0 0.0
  %2720 = vmatpush1.msra.mxu0 0.0
  %2721 = vmatprep.subr.mxu0 0.0
  %2722 = vmatpush1.msra.mxu0 0.0
  %2723 = vmatprep.subr.mxu0 0.0
  %2724 = vmatpush1.msra.mxu0 0.0
  %2725 = vmatprep.subr.mxu0 0.0
  %2726 = vmatpush1.msra.mxu0 0.0
  %2727 = vmatprep.subr.mxu0 0.0
  %2728 = vmatpush1.msra.mxu0 0.0
  %2729 = vmatprep.subr.mxu0 0.0
  %2730 = vmatpush1.msra.mxu0 0.0
  %2731 = vmatprep.subr.mxu0 0.0
  %2732 = vmatpush1.msra.mxu0 0.0
  %2733 = vmatprep.subr.mxu0 0.0
  %2734 = vmatpush1.msra.mxu0 0.0
  %2735 = vmatprep.subr.mxu0 0.0
  %2736 = vmatpush1.msra.mxu0 0.0
  %2737 = vmatprep.subr.mxu0 0.0
  %2738 = vmatpush1.msra.mxu0 0.0
  %2739 = vmatprep.subr.mxu0 0.0
  %2740 = vmatpush1.msra.mxu0 0.0
  %2741 = vmatprep.subr.mxu0 0.0
  %2742 = vmatpush1.msra.mxu0 0.0
  %2743 = vmatprep.subr.mxu0 0.0
  %2744 = vmatpush1.msra.mxu0 0.0
  %2745 = vmatprep.subr.mxu0 0.0
  %2746 = vmatpush1.msra.mxu0 0.0
  %2747 = vmatprep.subr.mxu0 0.0
  %2748 = vmatpush1.msra.mxu0 0.0
  %2749 = vmatprep.subr.mxu0 0.0
  %2750 = vmatpush1.msra.mxu0 0.0
  %2751 = vmatprep.subr.mxu0 0.0
  %2752 = vmatpush1.msra.mxu0 0.0
  %2753 = vmatprep.subr.mxu0 0.0
  %2754 = vmatpush1.msra.mxu0 0.0
  %2755 = vmatprep.subr.mxu0 0.0
  %2756 = vmatpush1.msra.mxu0 0.0
  %2757 = vmatprep.subr.mxu0 0.0
  %2758 = vmatpush1.msra.mxu0 0.0
  %2759 = vmatprep.subr.mxu0 0.0
  %2760 = vmatpush1.msra.mxu0 0.0
  %2761 = vmatprep.subr.mxu0 0.0
  %2762 = vmatpush1.msra.mxu0 0.0
  %2763 = vmatprep.subr.mxu0 0.0
  %2764 = vmatpush1.msra.mxu0 0.0
  %2765 = vmatprep.subr.mxu0 0.0
  %2766 = vmatpush1.msra.mxu0 0.0
  %2767 = vmatprep.subr.mxu0 0.0
  %2768 = vmatpush1.msra.mxu0 0.0
  %2769 = vmatprep.mubr.f32.mxu0 0.0
  %v2770 = vand.u32 %v2328, 4294901760
  %2771 = vmatmul.mubr.f32.gmra.mrb[0].mxu0 %v2770
  %v2772 = vpop.f32.mrb[0].mxu0
  %v2773 = vadd.f32 %v2701, %v2772
  %v2774 = vpop.f32.mrb[0].mxu0
  %2775 = vdwg.mxu0
  %v2776 = vmax.f32 %v2773, 0.0
  %2777 = vst [vmem:[%s3] sm:$0x7] %v2776
  // Predicated region
  $region14: #{mlp_forward.1} parent=0 // pred_check
    _
  $region15: #{mlp_forward.1} parent=0 // pred_check_branch
    %2779 = sbr.rel (0) target = $region17
  $region16: #{mlp_forward.1} parent=0 // pred_region
    _
  $region17: #{mlp_forward.1} parent=0 // pred_fallthru
    _
  // Predicated region
  $region18: #{mlp_forward.1} parent=0 // pred_check
    _
  $region19: #{mlp_forward.1} parent=0 // pred_check_branch
    %2781 = sbr.rel (0) target = $region21
  $region20: #{mlp_forward.1} parent=0 // pred_region
    _
  $region21: #{mlp_forward.1} parent=0 // pred_fallthru
    _

</llo_original>
